<compile_context>
chip_gen: v7x
topology: tpu7x:2x2x1
jax: 0.10.0
libtpu: 0.0.40
codegen_flags: <defaults>
</compile_context>

<pallas_src>
import functools

import jax
import jax.numpy as jnp
from jax import lax
from jax.experimental import pallas as pl
from jax.experimental.pallas import tpu as pltpu

feature_dims = {'vgg8': 512, 'vgg11': 512, 'vgg13': 512, 'vgg16': 512,
                'vgg19': 512, 'resnet18': 512, 'resnet34': 512, 'resnet50': 2048,
                'resnet101': 2048, 'densenet121': 1024, 'densenet169': 1664,
                'densenet201': 1920, 'densenet161': 2208, 'mobilenet_v2': 1280,
                'resnet8': 64, 'resnet14': 64, 'wrn_16_1': 64, 'wrn_40_1': 64,
                'shufflenet_v2_x0_5': 192, 'shufflenet_v2_x1_0': 464}

BN_EPS = 1e-5
_MIB = 1024 * 1024


def _round_up(x, m):
    return (x + m - 1) // m * m


@functools.lru_cache(maxsize=1)
def _device_kind():
    try:
        return jax.devices()[0].device_kind.lower()
    except Exception:
        return ""


@functools.lru_cache(maxsize=1)
def _vmem_limit_bytes():
    """Physical-VMEM-aware scoped limit (don't cap 128 MiB parts at 48 MiB)."""
    phys = None
    try:
        phys = int(getattr(pltpu.get_tpu_info(), "vmem_capacity_bytes", 0)) or None
    except Exception:
        phys = None
    if phys is None:
        kind = _device_kind()
        phys = 64 * _MIB if "v7" in kind else 128 * _MIB
    return max(32 * _MIB, min(phys - 16 * _MIB, 100 * _MIB))


@functools.lru_cache(maxsize=1)
def _default_tile_c():
    """v5e prefers 128 (4x128x128 MXU, single vst slot); 256 elsewhere."""
    kind = _device_kind()
    if "v5 lite" in kind or "v5e" in kind or "v5lite" in kind:
        return 128
    return 256


@functools.lru_cache(maxsize=1)
def _cores_per_chip():
    """2 TensorCores per chip on v7x; 1 on v5e/v6e."""
    return 2 if "v7" in _device_kind() else 1


# ----------------------------------------------------------------------------
# Kernels
# ----------------------------------------------------------------------------

def _fused_adapter_kernel(p_ref, w_ref, gamma_ref, beta_ref, o_ref,
                          sum_ref, sq_ref, *, tile_m, inv_m, nk, nm):
    """Grid = (cout j, k l, m i); j parallel, l/i arbitrary, m innermost.

    p_ref:     [tile_m, tile_k]   im2col patch tile (compute dtype)
    w_ref:     [tile_k, tile_c]   weight tile (compute dtype), resident over m
    gamma_ref: [1, tile_c]        BN scale (f32)
    beta_ref:  [1, tile_c]        BN shift (f32)
    o_ref:     [M_pad, tile_c]    resident f32 output slab (accumulator)
    sum_ref:   [1, tile_c]        f32 scratch: per-channel sum
    sq_ref:    [1, tile_c]        f32 scratch: per-channel sum of squares
    """
    l = pl.program_id(1)          # k-tile index (middle axis)
    i = pl.program_id(2)          # m-tile index (innermost axis)

    @pl.when(jnp.logical_and(l == 0, i == 0))
    def _init():
        sum_ref[...] = jnp.zeros_like(sum_ref)
        sq_ref[...] = jnp.zeros_like(sq_ref)

    row = pl.multiple_of(i * tile_m, tile_m)
    sl = pl.ds(row, tile_m)

    # MXU partial product, f32 accumulation.  No conv bias: it cancels exactly
    # under training-mode BN mean subtraction.
    partial = jnp.dot(p_ref[...], w_ref[...],
                      preferred_element_type=jnp.float32)

    def _stats(conv):
        # Zero-padded rows contribute exactly 0 to both sums.
        sum_ref[...] += jnp.sum(conv, axis=0, keepdims=True)
        sq_ref[...] += jnp.sum(conv * conv, axis=0, keepdims=True)

    if nk == 1:
        # Single k step: one store; statistics fed from the same registers.
        o_ref[sl, :] = partial
        _stats(partial)
    else:
        @pl.when(l == 0)
        def _first_k():
            o_ref[sl, :] = partial

        @pl.when(jnp.logical_and(l > 0, l < nk - 1))
        def _mid_k():
            o_ref[sl, :] = o_ref[sl, :] + partial

        @pl.when(l == nk - 1)
        def _last_k():
            conv = o_ref[sl, :] + partial      # single load
            o_ref[sl, :] = conv                # single store
            _stats(conv)                       # no reload (fused with accum)

    # Last (l, i) step of this cout slab: training-mode BN (biased variance)
    # + ReLU over the resident slab with a fused per-channel scale/shift.
    @pl.when(jnp.logical_and(l == nk - 1, i == nm - 1))
    def _epilogue():
        mean = sum_ref[...] * inv_m
        # NOTE: E[x^2]-E[x]^2 form in f32 with clamp; post-conv activations
        # have near-zero means so cancellation is benign at these scales.
        var = jnp.maximum(sq_ref[...] * inv_m - mean * mean, 0.0)
        inv_std = lax.rsqrt(var + BN_EPS)
        scale = gamma_ref[...] * inv_std
        shift = beta_ref[...] - mean * scale
        o_ref[...] = jnp.maximum(o_ref[...] * scale + shift, 0.0)


def _conv_stats_kernel(p_ref, w_ref, conv_ref, sum_ref, sq_ref, *acc, nk):
    """Two-pass fallback, pass 1.  Grid = (cout j, m i, k l); k innermost.

    Emits the conv output tile plus resident per-channel sum / sum-of-squares.
    The k reduction is carried in a [tm, tc] f32 scratch accumulator (only
    allocated when nk > 1), so the HBM-bound conv tile is written exactly once.
    """
    i = pl.program_id(1)
    l = pl.program_id(2)

    @pl.when(jnp.logical_and(i == 0, l == 0))
    def _init():
        sum_ref[...] = jnp.zeros_like(sum_ref)
        sq_ref[...] = jnp.zeros_like(sq_ref)

    partial = jnp.dot(p_ref[...], w_ref[...],
                      preferred_element_type=jnp.float32)

    def _emit(conv):
        conv_ref[...] = conv
        sum_ref[...] += jnp.sum(conv, axis=0, keepdims=True)
        sq_ref[...] += jnp.sum(conv * conv, axis=0, keepdims=True)

    if nk == 1:
        _emit(partial)
    else:
        acc_ref = acc[0]

        @pl.when(l == 0)
        def _first():
            acc_ref[...] = partial

        @pl.when(jnp.logical_and(l > 0, l < nk - 1))
        def _mid():
            acc_ref[...] = acc_ref[...] + partial

        @pl.when(l == nk - 1)
        def _last():
            _emit(acc_ref[...] + partial)


def _bn_relu_kernel(conv_ref, scale_ref, shift_ref, o_ref):
    """Two-pass fallback, pass 2: y = relu(conv * scale + shift)."""
    o_ref[...] = jnp.maximum(
        conv_ref[...] * scale_ref[...] + shift_ref[...], 0.0
    ).astype(o_ref.dtype)


# ----------------------------------------------------------------------------
# Wrapper
# ----------------------------------------------------------------------------

def _im2col_3x3_pad1(x_nhwc):
    """[N,H,W,C] -> [N*H*W, 9*C] with (kh, kw, cin) ordering (plain-JAX glue)."""
    n, h, w, c = x_nhwc.shape
    xp = jnp.pad(x_nhwc, ((0, 0), (1, 1), (1, 1), (0, 0)))
    cols = []
    for kh in range(3):
        for kw in range(3):
            cols.append(xp[:, kh:kh + h, kw:kw + w, :])
    patches = jnp.concatenate(cols, axis=-1)
    return patches.reshape(n * h * w, 9 * c)


def _fused_footprint_bytes(m_pad, tm, tk, tc, in_itemsize):
    # resident f32 slab (double-buffered by the pipeline) + input double-buffers
    return (2 * m_pad * tc * 4
            + 2 * tm * tk * in_itemsize
            + 2 * tk * tc * in_itemsize
            + 8 * tc * 4
            + 256 * 1024)


@functools.partial(jax.jit,
                   static_argnames=("tile_m", "tile_c", "tile_k",
                                    "compute_dtype", "force_two_pass"))
def adapter_forward(x_nchw, conv_w, bn_gamma, bn_beta, *,
                    tile_m=None, tile_c=None, tile_k=None,
                    compute_dtype=jnp.bfloat16, force_two_pass=False):
    """Forward pass of `adapter` for the Cin != Cout branch.

    x_nchw : [N, Cin, H, W]
    conv_w : [Cout, Cin, 3, 3]   (PyTorch layout)
    bn_gamma, bn_beta : [Cout]
    returns [N, Cout, H, W]
    """
    n, cin, h, w = x_nchw.shape
    cout = conv_w.shape[0]
    m_rows = n * h * w
    k = 9 * cin

    comp = jnp.dtype(compute_dtype)
    itemsize = comp.itemsize
    vmem_limit = _vmem_limit_bytes()

    # Cast BEFORE the im2col/pad glue so the materialized patches matrix is
    # already in the (narrow) compute dtype.
    x_nhwc = jnp.transpose(x_nchw, (0, 2, 3, 1)).astype(compute_dtype)
    patches = _im2col_3x3_pad1(x_nhwc)                               # [M, 9*Cin]
    # [Cout, Cin, 3, 3] -> [kh, kw, cin, cout] -> [9*Cin, Cout]
    w_mat = jnp.transpose(conv_w.astype(compute_dtype),
                          (2, 3, 1, 0)).reshape(k, cout)

    # ---- tile planning (multiples of 128 so (8,128) constraints always hold)
    m_round = _round_up(m_rows, 128)
    c_round = _round_up(cout, 128)
    k_round = _round_up(k, 128)

    tm = min(tile_m if tile_m is not None else 512, m_round)
    tc = min(tile_c if tile_c is not None else _default_tile_c(), c_round)
    tk = min(tile_k if tile_k is not None else 1024, k_round)

    # v7x megacore: make sure the "parallel" cout axis has >= 2 tiles when the
    # chip has 2 TensorCores (only when tile_c was not user-pinned).
    if (tile_c is None and _cores_per_chip() >= 2
            and c_round >= 256 and c_round // tc < 2):
        tc = 128

    # Fused path only if the resident [M_pad, tc] f32 slab (+ buffers) fits the
    # per-generation VMEM budget; otherwise shrink, then fall back to two-pass.
    use_fused = not force_two_pass
    if use_fused:
        budget = int(0.85 * vmem_limit)
        candidates = [(tc, tm)]
        if tile_c is None and tc > 128:
            candidates.append((128, tm))
        if tile_m is None and tm > 256:
            candidates.append((128 if tile_c is None else tc, 256))
        picked = None
        for cand_tc, cand_tm in candidates:
            m_pad_c = _round_up(m_rows, cand_tm)
            if _fused_footprint_bytes(m_pad_c, cand_tm, tk, cand_tc,
                                      itemsize) <= budget:
                picked = (cand_tc, cand_tm)
                break
        if picked is None:
            use_fused = False
        else:
            tc, tm = picked

    m_pad = _round_up(m_rows, tm)
    c_pad = _round_up(cout, tc)
    k_pad = _round_up(k, tk)
    nm, nc, nk = m_pad // tm, c_pad // tc, k_pad // tk

    patches = jnp.pad(patches, ((0, m_pad - m_rows), (0, k_pad - k)))
    w_mat = jnp.pad(w_mat, ((0, k_pad - k), (0, c_pad - cout)))
    gamma2 = jnp.pad(bn_gamma.astype(jnp.float32),
                     (0, c_pad - cout)).reshape(1, c_pad)
    beta2 = jnp.pad(bn_beta.astype(jnp.float32),
                    (0, c_pad - cout)).reshape(1, c_pad)

    inv_m = 1.0 / float(m_rows)

    if use_fused:
        kernel = functools.partial(_fused_adapter_kernel, tile_m=tm,
                                   inv_m=inv_m, nk=nk, nm=nm)
        out = pl.pallas_call(
            kernel,
            out_shape=jax.ShapeDtypeStruct((m_pad, c_pad), jnp.float32),
            grid_spec=pltpu.PrefetchScalarGridSpec(
                num_scalar_prefetch=0,
                grid=(nc, nk, nm),                       # (cout, k, m-innermost)
                in_specs=[
                    pl.BlockSpec((tm, tk), lambda j, l, i: (i, l)),   # patches
                    pl.BlockSpec((tk, tc), lambda j, l, i: (l, j)),   # weights
                    pl.BlockSpec((1, tc), lambda j, l, i: (0, j)),    # gamma
                    pl.BlockSpec((1, tc), lambda j, l, i: (0, j)),    # beta
                ],
                # Output slab resident across the k/m axes (accumulator).
                out_specs=pl.BlockSpec((m_pad, tc), lambda j, l, i: (0, j)),
                scratch_shapes=[pltpu.VMEM((1, tc), jnp.float32),     # sum
                                pltpu.VMEM((1, tc), jnp.float32)],    # sum sq
            ),
            compiler_params=pltpu.CompilerParams(
                dimension_semantics=("parallel", "arbitrary", "arbitrary"),
                vmem_limit_bytes=vmem_limit),
        )(patches, w_mat, gamma2, beta2)
    else:
        # ---- pass 1: conv matmul + per-channel statistics -------------------
        scratch = [pltpu.VMEM((tm, tc), jnp.float32)] if nk > 1 else []
        conv_out, csum, csq = pl.pallas_call(
            functools.partial(_conv_stats_kernel, nk=nk),
            out_shape=(jax.ShapeDtypeStruct((m_pad, c_pad), jnp.float32),
                       jax.ShapeDtypeStruct((1, c_pad), jnp.float32),
                       jax.ShapeDtypeStruct((1, c_pad), jnp.float32)),
            grid_spec=pltpu.PrefetchScalarGridSpec(
                num_scalar_prefetch=0,
                grid=(nc, nm, nk),                       # k innermost
                in_specs=[
                    pl.BlockSpec((tm, tk), lambda j, i, l: (i, l)),
                    pl.BlockSpec((tk, tc), lambda j, i, l: (l, j)),
                ],
                out_specs=(
                    pl.BlockSpec((tm, tc), lambda j, i, l: (i, j)),
                    pl.BlockSpec((1, tc), lambda j, i, l: (0, j)),
                    pl.BlockSpec((1, tc), lambda j, i, l: (0, j)),
                ),
                scratch_shapes=scratch,
            ),
            compiler_params=pltpu.CompilerParams(
                dimension_semantics=("parallel", "arbitrary", "arbitrary"),
                vmem_limit_bytes=vmem_limit),
        )(patches, w_mat)

        # ---- tiny per-channel scale/shift in XLA -----------------------------
        mean = csum * inv_m
        var = jnp.maximum(csq * inv_m - mean * mean, 0.0)
        inv_std = lax.rsqrt(var + BN_EPS)
        scale = gamma2 * inv_std
        shift = beta2 - mean * scale

        # ---- pass 2: elementwise BN + ReLU ----------------------------------
        out = pl.pallas_call(
            _bn_relu_kernel,
            out_shape=jax.ShapeDtypeStruct((m_pad, c_pad), jnp.float32),
            grid_spec=pltpu.PrefetchScalarGridSpec(
                num_scalar_prefetch=0,
                grid=(nm, nc),
                in_specs=[
                    pl.BlockSpec((tm, tc), lambda i, j: (i, j)),
                    pl.BlockSpec((1, tc), lambda i, j: (0, j)),
                    pl.BlockSpec((1, tc), lambda i, j: (0, j)),
                ],
                out_specs=pl.BlockSpec((tm, tc), lambda i, j: (i, j)),
            ),
            compiler_params=pltpu.CompilerParams(
                dimension_semantics=("parallel", "parallel"),
                vmem_limit_bytes=vmem_limit),
        )(conv_out, scale, shift)

    out = out[:m_rows, :cout]
    return jnp.transpose(out.reshape(n, h, w, cout),
                         (0, 3, 1, 2)).astype(x_nchw.dtype)


def adapter_apply(x_nchw, params, input_c_dim, output_c_dim, **kw):
    """Mirrors adapter.forward: identity when Cin == Cout, else conv blocks.

    Note: params["conv_b"] is accepted but unused — the conv bias cancels
    exactly under training-mode BatchNorm (mean subtraction).
    """
    if input_c_dim != output_c_dim:
        return adapter_forward(x_nchw, params["conv_w"],
                               params["bn_gamma"], params["bn_beta"], **kw)
    return x_nchw


# ----------------------------------------------------------------------------
# Reference + tests
# ----------------------------------------------------------------------------

def _reference_forward(x_nchw, conv_w, conv_b, bn_gamma, bn_beta):
    """Plain-JAX reference (NCHW conv + bias + training-mode BN + ReLU)."""
    y = lax.conv_general_dilated(
        x_nchw, conv_w, window_strides=(1, 1), padding=((1, 1), (1, 1)),
        dimension_numbers=("NCHW", "OIHW", "NCHW"))
    y = y + conv_b[None, :, None, None]
    mean = jnp.mean(y, axis=(0, 2, 3), keepdims=True)
    var = jnp.mean((y - mean) ** 2, axis=(0, 2, 3), keepdims=True)
    y = (y - mean) * lax.rsqrt(var + BN_EPS)
    y = y * bn_gamma[None, :, None, None] + bn_beta[None, :, None, None]
    return jnp.maximum(y, 0.0)


def _make_params(key, cin, cout):
    kw, kb = jax.random.split(key)
    return {
        "conv_w": jax.random.normal(kw, (cout, cin, 3, 3), jnp.float32) * 0.05,
        "conv_b": jax.random.normal(kb, (cout,), jnp.float32) * 0.05,
        "bn_gamma": jnp.ones((cout,), jnp.float32),   # PyTorch BN init
        "bn_beta": jnp.zeros((cout,), jnp.float32),
    }


def _check(out, ref, atol, rtol, tag):
    out = jax.block_until_ready(out)
    ref = jax.block_until_ready(ref)
    assert out.shape == ref.shape, (tag, out.shape, ref.shape)
    ok = jnp.allclose(out, ref, atol=atol, rtol=rtol)
    assert bool(ok), (tag, float(jnp.max(jnp.abs(out - ref))))


if __name__ == "__main__":
    key = jax.random.PRNGKey(0)
    kx, kp1, kp3 = jax.random.split(key, 3)

    # adapter(t_name='resnet18', s_name='resnet8') -> Cin=64, Cout=512
    cin = feature_dims["resnet8"]      # 64
    cout = feature_dims["resnet18"]    # 512
    N, H, W = 2, 16, 16                # M = N*H*W = 512, K = 9*Cin = 576

    x = jax.random.normal(kx, (N, cin, H, W), dtype=jnp.float32)
    params = _make_params(kp1, cin, cout)
    ref = _reference_forward(x, params["conv_w"], params["conv_b"],
                             params["bn_gamma"], params["bn_beta"])

    # 1) f32 fused path, small tiles: exercises cout/m/k tiling + k-accumulate
    #    into the resident slab (nk=3) + fused last-k statistics.
    out = adapter_apply(x, params, cin, cout, tile_m=128, tile_c=256,
                        tile_k=256, compute_dtype=jnp.float32)
    _check(out, ref, atol=5e-4, rtol=5e-4, tag="f32-fused-tiled")

    # 2) default fast path: bf16 MXU operands, auto tiles (nk=1 fast branch).
    out = adapter_apply(x, params, cin, cout)
    _check(out, ref, atol=3e-2, rtol=3e-2, tag="bf16-default")

    # 3) Cout not a multiple of the tile (shufflenet_v2_x0_5 = 192): padding
    #    + the >=2-cout-tile rule on 2-TC chips.
    cout3 = feature_dims["shufflenet_v2_x0_5"]   # 192
    params3 = _make_params(kp3, cin, cout3)
    ref3 = _reference_forward(x, params3["conv_w"], params3["conv_b"],
                              params3["bn_gamma"], params3["bn_beta"])
    out3 = adapter_apply(x, params3, cin, cout3, compute_dtype=jnp.float32)
    _check(out3, ref3, atol=5e-4, rtol=5e-4, tag="f32-cout192")

    # 4) bounded-VMEM two-pass fallback (conv+stats kernel, XLA scale/shift,
    #    elementwise BN+ReLU kernel), with k tiling to exercise the scratch acc.
    out4 = adapter_apply(x, params, cin, cout, tile_k=256,
                         compute_dtype=jnp.float32, force_two_pass=True)
    _check(out4, ref, atol=5e-4, rtol=5e-4, tag="f32-two-pass")

    # 5) identity branch (Cin == Cout).
    ident = adapter_apply(x, params, cin, cin)
    assert ident is x

    print("KERNEL_OK")
</pallas_src>

<mosaic_0001>
module attributes {stable_mosaic.version = 11 : i64} {
  func.func @_fused_adapter_kernel(%arg0: i32, %arg1: i32, %arg2: i32, %arg3: memref<128x256xf32, #tpu.memory_space<vmem>>, %arg4: memref<256x256xf32, #tpu.memory_space<vmem>>, %arg5: memref<1x256xf32, #tpu.memory_space<vmem>>, %arg6: memref<1x256xf32, #tpu.memory_space<vmem>>, %arg7: memref<512x256xf32, #tpu.memory_space<vmem>>, %arg8: memref<1x256xf32, #tpu.memory_space<vmem>>, %arg9: memref<1x256xf32, #tpu.memory_space<vmem>>) attributes {dimension_semantics = [#tpu.dimension_semantics<parallel>, #tpu.dimension_semantics<arbitrary>, #tpu.dimension_semantics<arbitrary>], iteration_bounds = array<i64: 2, 3, 4>, scalar_prefetch = 0 : i64, scratch_operands = 2 : i64, tpu.core_type = #tpu.core_type<tc>, window_params = [{transform_indices = @transform_0, window_bounds = array<i64: 128, 256>}, {transform_indices = @transform_1, window_bounds = array<i64: 256, 256>}, {transform_indices = @transform_2, window_bounds = array<i64: 1, 256>}, {transform_indices = @transform_3, window_bounds = array<i64: 1, 256>}, {transform_indices = @transform_4, window_bounds = array<i64: 512, 256>}]} {
    %c0_i32 = arith.constant 0 : i32
    %0 = arith.cmpi eq, %arg1, %c0_i32 : i32
    %c0_i32_0 = arith.constant 0 : i32
    %1 = arith.cmpi eq, %arg2, %c0_i32_0 : i32
    %2 = arith.andi %0, %1 : i1
    %3 = arith.extui %2 : i1 to i32
    %c0_i32_1 = arith.constant 0 : i32
    %4 = arith.cmpi ne, %3, %c0_i32_1 : i32
    scf.if %4 {
      %cst_13 = arith.constant 0.000000e+00 : f32
      %26 = vector.broadcast %cst_13 : f32 to vector<1x256xf32>
      %c0_14 = arith.constant 0 : index
      %c0_15 = arith.constant 0 : index
      %27 = vector.load %arg8[%c0_14, %c0_15] : memref<1x256xf32, #tpu.memory_space<vmem>>, vector<1x256xf32>
      tpu.vector_store %arg8[%c0_14, %c0_15], %26 {strides = array<i32>} : memref<1x256xf32, #tpu.memory_space<vmem>>, vector<1x256xf32>,
      %cst_16 = arith.constant 0.000000e+00 : f32
      %28 = vector.broadcast %cst_16 : f32 to vector<1x256xf32>
      %c0_17 = arith.constant 0 : index
      %c0_18 = arith.constant 0 : index
      %29 = vector.load %arg9[%c0_17, %c0_18] : memref<1x256xf32, #tpu.memory_space<vmem>>, vector<1x256xf32>
      tpu.vector_store %arg9[%c0_17, %c0_18], %28 {strides = array<i32>} : memref<1x256xf32, #tpu.memory_space<vmem>>, vector<1x256xf32>,
    } else {
    }
    %c128_i32 = arith.constant 128 : i32
    %5 = arith.muli %arg2, %c128_i32 : i32
    %6 = tpu.assume_multiple %5, 128 : i32
    %c0 = arith.constant 0 : index
    %c0_2 = arith.constant 0 : index
    %7 = vector.load %arg3[%c0, %c0_2] : memref<128x256xf32, #tpu.memory_space<vmem>>, vector<128x256xf32>
    %c0_3 = arith.constant 0 : index
    %c0_4 = arith.constant 0 : index
    %8 = vector.load %arg4[%c0_3, %c0_4] : memref<256x256xf32, #tpu.memory_space<vmem>>, vector<256x256xf32>
    %cst = arith.constant dense<0.000000e+00> : vector<128x256xf32>
    %9 = tpu.matmul %7, %8, %cst {dimension_numbers = #tpu.dot_dimension_numbers<[1], [0], [0], [1], [0, 0, 1, 1], [], []>} : vector<128x256xf32>, vector<256x256xf32>, vector<128x256xf32> -> vector<128x256xf32>
    %c0_i32_5 = arith.constant 0 : i32
    %10 = arith.cmpi eq, %arg1, %c0_i32_5 : i32
    %11 = arith.extui %10 : i1 to i32
    %c0_i32_6 = arith.constant 0 : i32
    %12 = arith.cmpi ne, %11, %c0_i32_6 : i32
    scf.if %12 {
      %26 = arith.index_cast %6 : i32 to index
      %c0_13 = arith.constant 0 : index
      %27 = vector.load %arg7[%26, %c0_13] : memref<512x256xf32, #tpu.memory_space<vmem>>, vector<128x256xf32>
      tpu.vector_store %arg7[%26, %c0_13], %9 {strides = array<i32>} : memref<512x256xf32, #tpu.memory_space<vmem>>, vector<128x256xf32>,
    } else {
    }
    %c0_i32_7 = arith.constant 0 : i32
    %13 = arith.cmpi sgt, %arg1, %c0_i32_7 : i32
    %c2_i32 = arith.constant 2 : i32
    %14 = arith.cmpi slt, %arg1, %c2_i32 : i32
    %15 = arith.andi %13, %14 : i1
    %16 = arith.extui %15 : i1 to i32
    %c0_i32_8 = arith.constant 0 : i32
    %17 = arith.cmpi ne, %16, %c0_i32_8 : i32
    scf.if %17 {
      %26 = arith.index_cast %6 : i32 to index
      %c0_13 = arith.constant 0 : index
      %27 = vector.load %arg7[%26, %c0_13] : memref<512x256xf32, #tpu.memory_space<vmem>>, vector<128x256xf32>
      %28 = arith.addf %27, %9 : vector<128x256xf32>
      %29 = arith.index_cast %6 : i32 to index
      %c0_14 = arith.constant 0 : index
      %30 = vector.load %arg7[%29, %c0_14] : memref<512x256xf32, #tpu.memory_space<vmem>>, vector<128x256xf32>
      tpu.vector_store %arg7[%29, %c0_14], %28 {strides = array<i32>} : memref<512x256xf32, #tpu.memory_space<vmem>>, vector<128x256xf32>,
    } else {
    }
    %c2_i32_9 = arith.constant 2 : i32
    %18 = arith.cmpi eq, %arg1, %c2_i32_9 : i32
    %19 = arith.extui %18 : i1 to i32
    %c0_i32_10 = arith.constant 0 : i32
    %20 = arith.cmpi ne, %19, %c0_i32_10 : i32
    scf.if %20 {
      %26 = arith.index_cast %6 : i32 to index
      %c0_13 = arith.constant 0 : index
      %27 = vector.load %arg7[%26, %c0_13] : memref<512x256xf32, #tpu.memory_space<vmem>>, vector<128x256xf32>
      %28 = arith.addf %27, %9 : vector<128x256xf32>
      %29 = arith.index_cast %6 : i32 to index
      %c0_14 = arith.constant 0 : index
      %30 = vector.load %arg7[%29, %c0_14] : memref<512x256xf32, #tpu.memory_space<vmem>>, vector<128x256xf32>
      tpu.vector_store %arg7[%29, %c0_14], %28 {strides = array<i32>} : memref<512x256xf32, #tpu.memory_space<vmem>>, vector<128x256xf32>,
      %c0_15 = arith.constant 0 : index
      %c0_16 = arith.constant 0 : index
      %31 = vector.load %arg8[%c0_15, %c0_16] : memref<1x256xf32, #tpu.memory_space<vmem>>, vector<1x256xf32>
      %cst_17 = arith.constant dense<0.000000e+00> : vector<256xf32>
      %32 = vector.multi_reduction <add>, %28, %cst_17 [0] : vector<128x256xf32> to vector<256xf32>
      %33 = vector.shape_cast %32 : vector<256xf32> to vector<1x256xf32>
      %34 = arith.addf %31, %33 : vector<1x256xf32>
      %c0_18 = arith.constant 0 : index
      %c0_19 = arith.constant 0 : index
      %35 = vector.load %arg8[%c0_18, %c0_19] : memref<1x256xf32, #tpu.memory_space<vmem>>, vector<1x256xf32>
      tpu.vector_store %arg8[%c0_18, %c0_19], %34 {strides = array<i32>} : memref<1x256xf32, #tpu.memory_space<vmem>>, vector<1x256xf32>,
      %c0_20 = arith.constant 0 : index
      %c0_21 = arith.constant 0 : index
      %36 = vector.load %arg9[%c0_20, %c0_21] : memref<1x256xf32, #tpu.memory_space<vmem>>, vector<1x256xf32>
      %37 = arith.mulf %28, %28 : vector<128x256xf32>
      %cst_22 = arith.constant dense<0.000000e+00> : vector<256xf32>
      %38 = vector.multi_reduction <add>, %37, %cst_22 [0] : vector<128x256xf32> to vector<256xf32>
      %39 = vector.shape_cast %38 : vector<256xf32> to vector<1x256xf32>
      %40 = arith.addf %36, %39 : vector<1x256xf32>
      %c0_23 = arith.constant 0 : index
      %c0_24 = arith.constant 0 : index
      %41 = vector.load %arg9[%c0_23, %c0_24] : memref<1x256xf32, #tpu.memory_space<vmem>>, vector<1x256xf32>
      tpu.vector_store %arg9[%c0_23, %c0_24], %40 {strides = array<i32>} : memref<1x256xf32, #tpu.memory_space<vmem>>, vector<1x256xf32>,
    } else {
    }
    %c2_i32_11 = arith.constant 2 : i32
    %21 = arith.cmpi eq, %arg1, %c2_i32_11 : i32
    %c3_i32 = arith.constant 3 : i32
    %22 = arith.cmpi eq, %arg2, %c3_i32 : i32
    %23 = arith.andi %21, %22 : i1
    %24 = arith.extui %23 : i1 to i32
    %c0_i32_12 = arith.constant 0 : i32
    %25 = arith.cmpi ne, %24, %c0_i32_12 : i32
    scf.if %25 {
      %c0_13 = arith.constant 0 : index
      %c0_14 = arith.constant 0 : index
      %26 = vector.load %arg8[%c0_13, %c0_14] : memref<1x256xf32, #tpu.memory_space<vmem>>, vector<1x256xf32>
      %cst_15 = arith.constant 0.001953125 : f32
      %27 = vector.broadcast %cst_15 : f32 to vector<1x256xf32>
      %28 = arith.mulf %26, %27 : vector<1x256xf32>
      %c0_16 = arith.constant 0 : index
      %c0_17 = arith.constant 0 : index
      %29 = vector.load %arg9[%c0_16, %c0_17] : memref<1x256xf32, #tpu.memory_space<vmem>>, vector<1x256xf32>
      %cst_18 = arith.constant 0.001953125 : f32
      %30 = vector.broadcast %cst_18 : f32 to vector<1x256xf32>
      %31 = arith.mulf %29, %30 : vector<1x256xf32>
      %32 = arith.mulf %28, %28 : vector<1x256xf32>
      %33 = arith.subf %31, %32 : vector<1x256xf32>
      %cst_19 = arith.constant 0.000000e+00 : f32
      %34 = vector.broadcast %cst_19 : f32 to vector<1x256xf32>
      %35 = arith.maximumf %33, %34 : vector<1x256xf32>
      %cst_20 = arith.constant 9.99999974E-6 : f32
      %36 = vector.broadcast %cst_20 : f32 to vector<1x256xf32>
      %37 = arith.addf %35, %36 : vector<1x256xf32>
      %38 = math.rsqrt %37 : vector<1x256xf32>
      %c0_21 = arith.constant 0 : index
      %c0_22 = arith.constant 0 : index
      %39 = vector.load %arg5[%c0_21, %c0_22] : memref<1x256xf32, #tpu.memory_space<vmem>>, vector<1x256xf32>
      %40 = arith.mulf %39, %38 : vector<1x256xf32>
      %c0_23 = arith.constant 0 : index
      %c0_24 = arith.constant 0 : index
      %41 = vector.load %arg6[%c0_23, %c0_24] : memref<1x256xf32, #tpu.memory_space<vmem>>, vector<1x256xf32>
      %42 = arith.mulf %28, %40 : vector<1x256xf32>
      %43 = arith.subf %41, %42 : vector<1x256xf32>
      %c0_25 = arith.constant 0 : index
      %c0_26 = arith.constant 0 : index
      %44 = vector.load %arg7[%c0_25, %c0_26] : memref<512x256xf32, #tpu.memory_space<vmem>>, vector<512x256xf32>
      %45 = vector.broadcast %40 : vector<1x256xf32> to vector<512x256xf32>
      %46 = arith.mulf %44, %45 : vector<512x256xf32>
      %47 = vector.broadcast %43 : vector<1x256xf32> to vector<512x256xf32>
      %48 = arith.addf %46, %47 : vector<512x256xf32>
      %cst_27 = arith.constant 0.000000e+00 : f32
      %49 = vector.broadcast %cst_27 : f32 to vector<512x256xf32>
      %50 = arith.maximumf %48, %49 : vector<512x256xf32>
      %c0_28 = arith.constant 0 : index
      %c0_29 = arith.constant 0 : index
      %51 = vector.load %arg7[%c0_28, %c0_29] : memref<512x256xf32, #tpu.memory_space<vmem>>, vector<512x256xf32>
      tpu.vector_store %arg7[%c0_28, %c0_29], %50 {strides = array<i32>} : memref<512x256xf32, #tpu.memory_space<vmem>>, vector<512x256xf32>,
    } else {
    }
    return
  }
  func.func @transform_0(%arg0: i32, %arg1: i32, %arg2: i32) -> (i32, i32) {
    %c0_i32 = arith.constant 0 : i32
    return %arg2, %arg1 : i32, i32
  }
  func.func @transform_1(%arg0: i32, %arg1: i32, %arg2: i32) -> (i32, i32) {
    %c0_i32 = arith.constant 0 : i32
    return %arg1, %arg0 : i32, i32
  }
  func.func @transform_2(%arg0: i32, %arg1: i32, %arg2: i32) -> (i32, i32) {
    %c0_i32 = arith.constant 0 : i32
    %c0_i32_0 = arith.constant 0 : i32
    return %c0_i32, %arg0 : i32, i32
  }
  func.func @transform_3(%arg0: i32, %arg1: i32, %arg2: i32) -> (i32, i32) {
    %c0_i32 = arith.constant 0 : i32
    %c0_i32_0 = arith.constant 0 : i32
    return %c0_i32, %arg0 : i32, i32
  }
  func.func @transform_4(%arg0: i32, %arg1: i32, %arg2: i32) -> (i32, i32) {
    %c0_i32 = arith.constant 0 : i32
    %c0_i32_0 = arith.constant 0 : i32
    return %c0_i32, %arg0 : i32, i32
  }
}

</mosaic_0001>

<llo_original>
// kernel: adapter_forward.1
$region0: #{adapter_forward.1}
  #allocation0 [shape = 'u32[]', space=smem, size = 0x4, offset = 0x4, fixed_abs, tag = 'smem constant byte address 0x4 - core index']
  #allocation1 [shape = 'u32[144,128]{1,0:T(1,128)}', space=vmem, size = 0x12000, scoped, tag = 'internal scratch']
  #allocation2 [shape = 'f32[1,256]{1,0:T(1,128)}', space=vmem, size = 0x400, scoped, tag = 'scratch operand']
  #allocation3 [shape = 'f32[1,256]{1,0:T(1,128)}', space=vmem, size = 0x400, scoped, tag = 'scratch operand']
  %s0 = inlined_call_operand.hbm [shape: f32[512,768], index: 0, kind: input, shape index: {}]
  %s1 = inlined_call_operand.hbm [shape: f32[768,512], index: 1, kind: input, shape index: {}]
  %s2 = inlined_call_operand.hbm [shape: f32[1,512], index: 2, kind: input, shape index: {}]
  %s3 = inlined_call_operand.hbm [shape: f32[1,512], index: 3, kind: input, shape index: {}]
  %s4 = inlined_call_operand.hbm [shape: f32[512,512], index: 4, kind: output, shape index: {}]
  %s5 = sld [smem:[#allocation0]]
  $region85: #{adapter_forward.1} parent=0
    _
  %s7 = ssub.s32 1, %s5
  %s8 = scalar_select 0, %s7, %s5
  $region1: #{adapter_forward.1} parent=0
    #allocation4 [shape = 'u8[262144]{0}', space=vmem, size = 0x40000, scoped, tag = 'input window, operand 0']
    #allocation5 [shape = 's32[2]{0}', space=sflag, size = 0x8, scoped, tag = 'scoped memory for adapter_forward.1']
    #allocation6 [shape = 's32[2]{0}', space=sflag, size = 0x8, scoped, tag = 'scoped memory for adapter_forward.1']
    #allocation7 [shape = 'u8[524288]{0}', space=vmem, size = 0x80000, scoped, tag = 'input window, operand 1']
    #allocation8 [shape = 's32[2]{0}', space=sflag, size = 0x8, scoped, tag = 'scoped memory for adapter_forward.1']
    #allocation9 [shape = 'u8[2048]{0}', space=vmem, size = 0x800, scoped, tag = 'input window, operand 2']
    #allocation10 [shape = 'u8[2048]{0}', space=vmem, size = 0x800, scoped, tag = 'input window, operand 3']
    #allocation11 [shape = 's32[2]{0}', space=sflag, size = 0x8, scoped, tag = 'scoped memory for adapter_forward.1']
    #allocation12 [shape = 'u8[1048576]{0}', space=vmem, size = 0x100000, scoped, tag = 'output window, operand 0']
    %9 = vsyncpa [#allocation5], 0
    %s10 = scalar_lea.sflag [#allocation5], 1
    %11 = vsyncpa %s10, 0
    %12 = vsyncpa [#allocation8], 0
    %s13 = scalar_lea.sflag [#allocation8], 1
    %14 = vsyncpa %s13, 0
    %15 = vsyncpa [#allocation11], 0
    %s16 = scalar_lea.sflag [#allocation11], 1
    %17 = vsyncpa %s16, 0
    %18 = vsyncpa [#allocation6], 0
    %s19 = scalar_lea.sflag [#allocation6], 1
    %20 = vsyncpa %s19, 0
    loop: start=0, step=1, limit=26
    $region2: #{adapter_forward.1} parent=1 // loop_pre_header
      _
    $region3: #{adapter_forward.1} parent=1 // loop_header
      %s22 = sphi 0, %s26
      %p23 = scmp.ge.s32.totalorder %s22, 26
      %s29 = sphi 0, %s48
      %s30 = sphi 0, %s44
      %s31 = sphi 0, %s40
      %s32 = sphi 0, %s29
      %s33 = sphi 0, %s30
      %s34 = sphi 0, %s31
      %s35 = sphi 0, %s32
      %s36 = sphi 0, %s33
      %s37 = sphi 0, %s34
      %s53 = sphi 0, %s55
      %s56 = sphi 0, %s53
      %s57 = sphi 0, %s56
      %s73 = sphi 0, %s57
      %s81 = sphi 0, %s83
      %s84 = sphi 0, %s81
      %s85 = sphi 0, %s84
      %s101 = sphi 0, %s85
      %s107 = sphi 0, %s109
      %s110 = sphi 0, %s107
      %s111 = sphi 0, %s110
      %s127 = sphi 0, %s111
      %s133 = sphi 0, %s135
      %s136 = sphi 0, %s133
      %s137 = sphi 0, %s136
      %s153 = sphi 0, %s137
      %s159 = sphi 0, %s161
      %s162 = sphi 0, %s159
      %s163 = sphi 0, %s162
      %s179 = sphi 0, %s163
    $region4: #{adapter_forward.1} parent=1 // loop_header_branch
      %25 = sbr.rel (%p23) target = $region8
    $region5: #{adapter_forward.1} parent=1 // loop_body
      %s27 = ssub.s32 %s22, 1
      %s28 = ssub.s32 %s22, 2
      %s38 = sadd.s32 1, %s31
      %p39 = scmp.ge.s32.totalorder %s38, 4
      %s40 = scalar_select %p39, 0, %s38
      %s41 = sadd.s32 1, %s30
      %s42 = scalar_select %p39, %s41, %s30
      %p43 = scmp.ge.s32.totalorder %s42, 3
      %s44 = scalar_select %p43, 0, %s42
      %s45 = sadd.s32 1, %s29
      %s46 = scalar_select %p43, %s45, %s29
      %p47 = scmp.ge.s32.totalorder %s46, 2
      %s48 = scalar_select %p47, 0, %s46
      %s49 = ssub.s32 %s31, %s40
      %s50 = ssub.s32 %s30, %s44
      %s51 = sor.u32 %s49, %s50
      %p52 = scmp.eq.s32.totalorder %s51, 0
      %s54 = sadd.s32 %s53, 1
      %s55 = scalar_select %p52, %s53, %s54
      %p58 = pneg %p52
      %p59 = scmp.eq.s32.totalorder %s22, 23
      %p60 = por %p58, %p59
      %p61 = scmp.ne.s32.totalorder %s53, %s56
      %p62 = scmp.eq.s32.totalorder %s22, 0
      %p63 = por %p61, %p62
      %p64 = scmp.ne.s32.totalorder %s53, %s56
      %p65 = scmp.eq.s32.totalorder %s27, 23
      %p66 = por %p64, %p65
      %p67 = scmp.ne.s32.totalorder %s56, %s57
      %p68 = scmp.eq.s32.totalorder %s27, 0
      %p69 = por %p67, %p68
      %p70 = scmp.ne.s32.totalorder %s56, %s57
      %p71 = scmp.eq.s32.totalorder %s28, 23
      %p72 = por %p70, %p71
      %p74 = scmp.ne.s32.totalorder %s57, %s73
      %p75 = scmp.eq.s32.totalorder %s28, 0
      %p76 = por %p74, %p75
      %s77 = ssub.s32 %s30, %s44
      %s78 = ssub.s32 %s29, %s48
      %s79 = sor.u32 %s77, %s78
      %p80 = scmp.eq.s32.totalorder %s79, 0
      %s82 = sadd.s32 %s81, 1
      %s83 = scalar_select %p80, %s81, %s82
      %p86 = pneg %p80
      %p87 = scmp.eq.s32.totalorder %s22, 23
      %p88 = por %p86, %p87
      %p89 = scmp.ne.s32.totalorder %s81, %s84
      %p90 = scmp.eq.s32.totalorder %s22, 0
      %p91 = por %p89, %p90
      %p92 = scmp.ne.s32.totalorder %s81, %s84
      %p93 = scmp.eq.s32.totalorder %s27, 23
      %p94 = por %p92, %p93
      %p95 = scmp.ne.s32.totalorder %s84, %s85
      %p96 = scmp.eq.s32.totalorder %s27, 0
      %p97 = por %p95, %p96
      %p98 = scmp.ne.s32.totalorder %s84, %s85
      %p99 = scmp.eq.s32.totalorder %s28, 23
      %p100 = por %p98, %p99
      %p102 = scmp.ne.s32.totalorder %s85, %s101
      %p103 = scmp.eq.s32.totalorder %s28, 0
      %p104 = por %p102, %p103
      %s105 = ssub.s32 %s29, %s48
      %p106 = scmp.eq.s32.totalorder %s105, 0
      %s108 = sadd.s32 %s107, 1
      %s109 = scalar_select %p106, %s107, %s108
      %p112 = pneg %p106
      %p113 = scmp.eq.s32.totalorder %s22, 23
      %p114 = por %p112, %p113
      %p115 = scmp.ne.s32.totalorder %s107, %s110
      %p116 = scmp.eq.s32.totalorder %s22, 0
      %p117 = por %p115, %p116
      %p118 = scmp.ne.s32.totalorder %s107, %s110
      %p119 = scmp.eq.s32.totalorder %s27, 23
      %p120 = por %p118, %p119
      %p121 = scmp.ne.s32.totalorder %s110, %s111
      %p122 = scmp.eq.s32.totalorder %s27, 0
      %p123 = por %p121, %p122
      %p124 = scmp.ne.s32.totalorder %s110, %s111
      %p125 = scmp.eq.s32.totalorder %s28, 23
      %p126 = por %p124, %p125
      %p128 = scmp.ne.s32.totalorder %s111, %s127
      %p129 = scmp.eq.s32.totalorder %s28, 0
      %p130 = por %p128, %p129
      %s131 = ssub.s32 %s29, %s48
      %p132 = scmp.eq.s32.totalorder %s131, 0
      %s134 = sadd.s32 %s133, 1
      %s135 = scalar_select %p132, %s133, %s134
      %p138 = pneg %p132
      %p139 = scmp.eq.s32.totalorder %s22, 23
      %p140 = por %p138, %p139
      %p141 = scmp.ne.s32.totalorder %s133, %s136
      %p142 = scmp.eq.s32.totalorder %s22, 0
      %p143 = por %p141, %p142
      %p144 = scmp.ne.s32.totalorder %s133, %s136
      %p145 = scmp.eq.s32.totalorder %s27, 23
      %p146 = por %p144, %p145
      %p147 = scmp.ne.s32.totalorder %s136, %s137
      %p148 = scmp.eq.s32.totalorder %s27, 0
      %p149 = por %p147, %p148
      %p150 = scmp.ne.s32.totalorder %s136, %s137
      %p151 = scmp.eq.s32.totalorder %s28, 23
      %p152 = por %p150, %p151
      %p154 = scmp.ne.s32.totalorder %s137, %s153
      %p155 = scmp.eq.s32.totalorder %s28, 0
      %p156 = por %p154, %p155
      %s157 = ssub.s32 %s29, %s48
      %p158 = scmp.eq.s32.totalorder %s157, 0
      %s160 = sadd.s32 %s159, 1
      %s161 = scalar_select %p158, %s159, %s160
      %p164 = pneg %p158
      %p165 = scmp.eq.s32.totalorder %s22, 23
      %p166 = por %p164, %p165
      %p167 = scmp.ne.s32.totalorder %s159, %s162
      %p168 = scmp.eq.s32.totalorder %s22, 0
      %p169 = por %p167, %p168
      %p170 = scmp.ne.s32.totalorder %s159, %s162
      %p171 = scmp.eq.s32.totalorder %s27, 23
      %p172 = por %p170, %p171
      %p173 = scmp.ne.s32.totalorder %s162, %s163
      %p174 = scmp.eq.s32.totalorder %s27, 0
      %p175 = por %p173, %p174
      %p176 = scmp.ne.s32.totalorder %s162, %s163
      %p177 = scmp.eq.s32.totalorder %s28, 23
      %p178 = por %p176, %p177
      %p180 = scmp.ne.s32.totalorder %s163, %s179
      %p181 = scmp.eq.s32.totalorder %s28, 0
      %p182 = por %p180, %p181
      %p183 = scmp.le.s32.totalorder 1, %s22
      %p184 = scmp.lt.s32.totalorder %s22, 25
      %p185 = pnand %p183, %p184
      %p186 = pneg %p185
      // Predicated region
      $region9: #{adapter_forward.1} parent=5 // pred_check
        _
      $region10: #{adapter_forward.1} parent=5 // pred_check_branch
        %188 = sbr.rel (%p185) target = $region12
      $region11: #{adapter_forward.1} parent=5 // pred_region
        %s189 = ssub.s32 %s22, 1
      $region12: #{adapter_forward.1} parent=5 // pred_fallthru
        _
      %p190 = scmp.lt.s32.totalorder %s22, 24
      // Predicated region
      $region13: #{adapter_forward.1} parent=5 // pred_check
        %p191 = pneg %p190
      $region14: #{adapter_forward.1} parent=5 // pred_check_branch
        %193 = sbr.rel (%p191) target = $region16
      $region15: #{adapter_forward.1} parent=5 // pred_region
        // Predicated region
        $region17: #{adapter_forward.1} parent=15 // pred_check
          %p194 = pneg %p63
        $region18: #{adapter_forward.1} parent=15 // pred_check_branch
          %196 = sbr.rel (%p194) target = $region20
        $region19: #{adapter_forward.1} parent=15 // pred_region
          %s197 = sand.u32 %s53, 1
          %s198 = scalar_lea.sflag [#allocation5], %s197
          %s199 = sand.u32 %s53, 1
          %s200 = smul.addr %s199, 256
          %s201 = scalar_lea.vmem [#allocation4], %s200
          %s202 = smul.u32 16, %s31
          %s203 = smul.u32 2, %s30
          %s205 = ssub.s32 4096, 4096
          %206 = vsyncadd %s198, %s205
          %s207 = smul.addr %s202, 6
          %s208 = sadd.s32 %s203, %s207
          %s209 = smul.addr %s208, 128
          %s210 = scalar_lea.hbm %s0, %s209
          %s211 = sshll.u32 %s201, 4
          %s212 = int_to_ptr.vmem [resolvable:$true] %s211
          %217 = dma.hbm_to_vmem [thread:$0]  %s210, 4096, %s212, %s198, 768, 256, 16
        $region20: #{adapter_forward.1} parent=15 // pred_fallthru
          _
        // Predicated region
        $region21: #{adapter_forward.1} parent=15 // pred_check
          %p218 = pneg %p91
        $region22: #{adapter_forward.1} parent=15 // pred_check_branch
          %220 = sbr.rel (%p218) target = $region24
        $region23: #{adapter_forward.1} parent=15 // pred_region
          %s221 = sand.u32 %s22, 1
          %s222 = scalar_lea.sflag [#allocation8], %s221
          %s223 = sand.u32 %s81, 1
          %s224 = smul.addr %s223, 512
          %s225 = scalar_lea.vmem [#allocation7], %s224
          %s226 = smul.u32 32, %s30
          %s227 = smul.u32 2, %s29
          %s229 = ssub.s32 8192, 8192
          %230 = vsyncadd %s222, %s229
          %s231 = smul.addr %s226, 4
          %s232 = sadd.s32 %s227, %s231
          %s233 = smul.addr %s232, 128
          %s234 = scalar_lea.hbm %s1, %s233
          %s235 = sshll.u32 %s225, 4
          %s236 = int_to_ptr.vmem [resolvable:$true] %s235
          %241 = dma.hbm_to_vmem [thread:$0]  %s234, 8192, %s236, %s222, 512, 256, 16
        $region24: #{adapter_forward.1} parent=15 // pred_fallthru
          _
        // Predicated region
        $region25: #{adapter_forward.1} parent=15 // pred_check
          %p242 = pneg %p117
        $region26: #{adapter_forward.1} parent=15 // pred_check_branch
          %244 = sbr.rel (%p242) target = $region28
        $region27: #{adapter_forward.1} parent=15 // pred_region
          %s245 = sand.u32 %s22, 1
          %s246 = scalar_lea.sflag [#allocation8], %s245
          %s247 = sand.u32 %s107, 1
          %s248 = smul.addr %s247, 2
          %s249 = scalar_lea.vmem [#allocation9], %s248
          %s250 = smul.u32 2, %s29
          %s252 = ssub.s32 32, 32
          %253 = vsyncadd %s246, %s252
          %s254 = smul.addr %s250, 16
          %s255 = scalar_lea.hbm %s2, %s254
          %s257 = sshll.u32 %s249, 4
          %s258 = int_to_ptr.vmem [resolvable:$true] %s257
          %260 = dma.hbm_to_vmem [thread:$0]  %s255, 32, %s258, %s246
        $region28: #{adapter_forward.1} parent=15 // pred_fallthru
          _
        // Predicated region
        $region29: #{adapter_forward.1} parent=15 // pred_check
          %p261 = pneg %p143
        $region30: #{adapter_forward.1} parent=15 // pred_check_branch
          %263 = sbr.rel (%p261) target = $region32
        $region31: #{adapter_forward.1} parent=15 // pred_region
          %s264 = sand.u32 %s133, 1
          %s265 = scalar_lea.sflag [#allocation11], %s264
          %s266 = sand.u32 %s133, 1
          %s267 = smul.addr %s266, 2
          %s268 = scalar_lea.vmem [#allocation10], %s267
          %s269 = smul.u32 2, %s29
          %s271 = ssub.s32 32, 32
          %272 = vsyncadd %s265, %s271
          %s273 = smul.addr %s269, 16
          %s274 = scalar_lea.hbm %s3, %s273
          %s276 = sshll.u32 %s268, 4
          %s277 = int_to_ptr.vmem [resolvable:$true] %s276
          %279 = dma.hbm_to_vmem [thread:$0]  %s274, 32, %s277, %s265
        $region32: #{adapter_forward.1} parent=15 // pred_fallthru
          _
      $region16: #{adapter_forward.1} parent=5 // pred_fallthru
        _
      %p280 = scmp.le.s32.totalorder 1, %s22
      %p281 = scmp.lt.s32.totalorder %s22, 25
      %p282 = pnand %p280, %p281
      %p283 = pneg %p282
      // Predicated region
      $region33: #{adapter_forward.1} parent=5 // pred_check
        _
      $region34: #{adapter_forward.1} parent=5 // pred_check_branch
        %285 = sbr.rel (%p282) target = $region36
      $region35: #{adapter_forward.1} parent=5 // pred_region
        %s286 = ssub.s32 %s22, 1
        %s287 = sand.u32 %s56, 1
        %s288 = scalar_lea.sflag [#allocation5], %s287
        %s289 = sand.u32 %s56, 1
        %s290 = smul.addr %s289, 256
        %s291 = scalar_lea.vmem [#allocation4], %s290
        // Predicated region
        $region37: #{adapter_forward.1} parent=35 // pred_check
          %p292 = pneg %p69
        $region38: #{adapter_forward.1} parent=35 // pred_check_branch
          %294 = sbr.rel (%p292) target = $region40
        $region39: #{adapter_forward.1} parent=35 // pred_region
          %295 = dma.done %s288, 4096
        $region40: #{adapter_forward.1} parent=35 // pred_fallthru
          _
        %s296 = sand.u32 %s27, 1
        %s297 = scalar_lea.sflag [#allocation8], %s296
        %s298 = sand.u32 %s84, 1
        %s299 = smul.addr %s298, 512
        %s300 = scalar_lea.vmem [#allocation7], %s299
        // Predicated region
        $region41: #{adapter_forward.1} parent=35 // pred_check
          %p301 = pneg %p97
        $region42: #{adapter_forward.1} parent=35 // pred_check_branch
          %303 = sbr.rel (%p301) target = $region44
        $region43: #{adapter_forward.1} parent=35 // pred_region
          %304 = dma.done %s297, 8192
        $region44: #{adapter_forward.1} parent=35 // pred_fallthru
          _
        %s305 = sand.u32 %s27, 1
        %s306 = scalar_lea.sflag [#allocation8], %s305
        %s307 = sand.u32 %s110, 1
        %s308 = smul.addr %s307, 2
        %s309 = scalar_lea.vmem [#allocation9], %s308
        // Predicated region
        $region45: #{adapter_forward.1} parent=35 // pred_check
          %p310 = pneg %p123
        $region46: #{adapter_forward.1} parent=35 // pred_check_branch
          %312 = sbr.rel (%p310) target = $region48
        $region47: #{adapter_forward.1} parent=35 // pred_region
          %313 = dma.done %s306, 32
        $region48: #{adapter_forward.1} parent=35 // pred_fallthru
          _
        %s314 = sand.u32 %s136, 1
        %s315 = scalar_lea.sflag [#allocation11], %s314
        %s316 = sand.u32 %s136, 1
        %s317 = smul.addr %s316, 2
        %s318 = scalar_lea.vmem [#allocation10], %s317
        // Predicated region
        $region49: #{adapter_forward.1} parent=35 // pred_check
          %p319 = pneg %p149
        $region50: #{adapter_forward.1} parent=35 // pred_check_branch
          %321 = sbr.rel (%p319) target = $region52
        $region51: #{adapter_forward.1} parent=35 // pred_region
          %322 = dma.done %s315, 32
        $region52: #{adapter_forward.1} parent=35 // pred_fallthru
          _
        %s323 = sand.u32 %s56, 1
        %s324 = scalar_lea.sflag [#allocation5], %s323
        %s325 = sand.u32 %s56, 1
        %s326 = smul.addr %s325, 256
        %s327 = scalar_lea.vmem [#allocation4], %s326
        %p328 = pneg %p69
        %p329 = pneg %p66
        %s330 = sand.u32 %s27, 1
        %s331 = scalar_lea.sflag [#allocation8], %s330
        %s332 = sand.u32 %s84, 1
        %s333 = smul.addr %s332, 512
        %s334 = scalar_lea.vmem [#allocation7], %s333
        %p335 = pneg %p97
        %p336 = pneg %p94
        %s337 = sand.u32 %s27, 1
        %s338 = scalar_lea.sflag [#allocation8], %s337
        %s339 = sand.u32 %s110, 1
        %s340 = smul.addr %s339, 2
        %s341 = scalar_lea.vmem [#allocation9], %s340
        %p342 = pneg %p123
        %p343 = pneg %p120
        %s344 = sand.u32 %s136, 1
        %s345 = scalar_lea.sflag [#allocation11], %s344
        %s346 = sand.u32 %s136, 1
        %s347 = smul.addr %s346, 2
        %s348 = scalar_lea.vmem [#allocation10], %s347
        %p349 = pneg %p149
        %p350 = pneg %p146
        %p351 = pneg %p175
        %p352 = pneg %p172
        %s353 = sand.u32 %s162, 1
        %s354 = scalar_lea.sflag [#allocation6], %s353
        %s355 = sand.u32 %s162, 1
        %s356 = smul.addr %s355, 1024
        %s357 = scalar_lea.vmem [#allocation12], %s356
        %s358 = smul.u32 16, %s34
        %s359 = smul.u32 2, %s33
        %s360 = smul.u32 32, %s33
        %s361 = smul.u32 2, %s32
        %s362 = smul.u32 2, %s32
        %s363 = smul.u32 2, %s32
        %s364 = smul.u32 2, %s32
        %p365 = scmp.eq.s32.totalorder %s33, 0
        %p366 = scmp.eq.s32.totalorder %s34, 0
        %p367 = pnand %p365, %p366
        %p368 = pneg %p367
        // Predicated region
        $region53: #{adapter_forward.1} parent=35 // pred_check
          _
        $region54: #{adapter_forward.1} parent=35 // pred_check_branch
          %370 = sbr.rel (%p367) target = $region56
        $region55: #{adapter_forward.1} parent=35 // pred_region
          %v371 = vlaneseq
          %vm372 = vcmp.ge.s32.totalorder %v371, 0
          %vm373 = vcmp.lt.s32.totalorder %v371, 256
          %vm374 = vmand %vm372, %vm373
          %375 = vst.msk [vmem:[#allocation2] sm:$0x3] %vm374, 0.0
          %376 = vst.msk [vmem:[#allocation3] sm:$0x3] %vm374, 0.0
        $region56: #{adapter_forward.1} parent=35 // pred_fallthru
          _
        %s377 = smul.u32 %s34, 128
        %v378 = vld [vmem:[%s291] sm:$0xff]
        %v379 = vld [vmem:[%s291 + $0x8] sm:$0xff]
        %v380 = vld [vmem:[%s291 + $0x10] sm:$0xff]
        %v381 = vld [vmem:[%s291 + $0x18] sm:$0xff]
        %v382 = vld [vmem:[%s291 + $0x20] sm:$0xff]
        %v383 = vld [vmem:[%s291 + $0x28] sm:$0xff]
        %v384 = vld [vmem:[%s291 + $0x30] sm:$0xff]
        %v385 = vld [vmem:[%s291 + $0x38] sm:$0xff]
        %v386 = vld [vmem:[%s291 + $0x40] sm:$0xff]
        %v387 = vld [vmem:[%s291 + $0x48] sm:$0xff]
        %v388 = vld [vmem:[%s291 + $0x50] sm:$0xff]
        %v389 = vld [vmem:[%s291 + $0x58] sm:$0xff]
        %v390 = vld [vmem:[%s291 + $0x60] sm:$0xff]
        %v391 = vld [vmem:[%s291 + $0x68] sm:$0xff]
        %v392 = vld [vmem:[%s291 + $0x70] sm:$0xff]
        %v393 = vld [vmem:[%s291 + $0x78] sm:$0xff]
        %v394 = vld [vmem:[%s291 + $0x80] sm:$0xff]
        %v395 = vld [vmem:[%s291 + $0x88] sm:$0xff]
        %v396 = vld [vmem:[%s291 + $0x90] sm:$0xff]
        %v397 = vld [vmem:[%s291 + $0x98] sm:$0xff]
        %v398 = vld [vmem:[%s291 + $0xa0] sm:$0xff]
        %v399 = vld [vmem:[%s291 + $0xa8] sm:$0xff]
        %v400 = vld [vmem:[%s291 + $0xb0] sm:$0xff]
        %v401 = vld [vmem:[%s291 + $0xb8] sm:$0xff]
        %v402 = vld [vmem:[%s291 + $0xc0] sm:$0xff]
        %v403 = vld [vmem:[%s291 + $0xc8] sm:$0xff]
        %v404 = vld [vmem:[%s291 + $0xd0] sm:$0xff]
        %v405 = vld [vmem:[%s291 + $0xd8] sm:$0xff]
        %v406 = vld [vmem:[%s291 + $0xe0] sm:$0xff]
        %v407 = vld [vmem:[%s291 + $0xe8] sm:$0xff]
        %v408 = vld [vmem:[%s291 + $0xf0] sm:$0xff]
        %v409 = vld [vmem:[%s291 + $0xf8] sm:$0xff]
        %v410 = vld [vmem:[%s300] sm:$0xff]
        %v411 = vld [vmem:[%s300 + $0x8] sm:$0xff]
        %v412 = vld [vmem:[%s300 + $0x10] sm:$0xff]
        %v413 = vld [vmem:[%s300 + $0x18] sm:$0xff]
        %v414 = vld [vmem:[%s300 + $0x20] sm:$0xff]
        %v415 = vld [vmem:[%s300 + $0x28] sm:$0xff]
        %v416 = vld [vmem:[%s300 + $0x30] sm:$0xff]
        %v417 = vld [vmem:[%s300 + $0x38] sm:$0xff]
        %v418 = vld [vmem:[%s300 + $0x40] sm:$0xff]
        %v419 = vld [vmem:[%s300 + $0x48] sm:$0xff]
        %v420 = vld [vmem:[%s300 + $0x50] sm:$0xff]
        %v421 = vld [vmem:[%s300 + $0x58] sm:$0xff]
        %v422 = vld [vmem:[%s300 + $0x60] sm:$0xff]
        %v423 = vld [vmem:[%s300 + $0x68] sm:$0xff]
        %v424 = vld [vmem:[%s300 + $0x70] sm:$0xff]
        %v425 = vld [vmem:[%s300 + $0x78] sm:$0xff]
        %v426 = vld [vmem:[%s300 + $0x80] sm:$0xff]
        %v427 = vld [vmem:[%s300 + $0x88] sm:$0xff]
        %v428 = vld [vmem:[%s300 + $0x90] sm:$0xff]
        %v429 = vld [vmem:[%s300 + $0x98] sm:$0xff]
        %v430 = vld [vmem:[%s300 + $0xa0] sm:$0xff]
        %v431 = vld [vmem:[%s300 + $0xa8] sm:$0xff]
        %v432 = vld [vmem:[%s300 + $0xb0] sm:$0xff]
        %v433 = vld [vmem:[%s300 + $0xb8] sm:$0xff]
        %v434 = vld [vmem:[%s300 + $0xc0] sm:$0xff]
        %v435 = vld [vmem:[%s300 + $0xc8] sm:$0xff]
        %v436 = vld [vmem:[%s300 + $0xd0] sm:$0xff]
        %v437 = vld [vmem:[%s300 + $0xd8] sm:$0xff]
        %v438 = vld [vmem:[%s300 + $0xe0] sm:$0xff]
        %v439 = vld [vmem:[%s300 + $0xe8] sm:$0xff]
        %v440 = vld [vmem:[%s300 + $0xf0] sm:$0xff]
        %v441 = vld [vmem:[%s300 + $0xf8] sm:$0xff]
        %v442 = vld [vmem:[%s300 + $0x100] sm:$0xff]
        %v443 = vld [vmem:[%s300 + $0x108] sm:$0xff]
        %v444 = vld [vmem:[%s300 + $0x110] sm:$0xff]
        %v445 = vld [vmem:[%s300 + $0x118] sm:$0xff]
        %v446 = vld [vmem:[%s300 + $0x120] sm:$0xff]
        %v447 = vld [vmem:[%s300 + $0x128] sm:$0xff]
        %v448 = vld [vmem:[%s300 + $0x130] sm:$0xff]
        %v449 = vld [vmem:[%s300 + $0x138] sm:$0xff]
        %v450 = vld [vmem:[%s300 + $0x140] sm:$0xff]
        %v451 = vld [vmem:[%s300 + $0x148] sm:$0xff]
        %v452 = vld [vmem:[%s300 + $0x150] sm:$0xff]
        %v453 = vld [vmem:[%s300 + $0x158] sm:$0xff]
        %v454 = vld [vmem:[%s300 + $0x160] sm:$0xff]
        %v455 = vld [vmem:[%s300 + $0x168] sm:$0xff]
        %v456 = vld [vmem:[%s300 + $0x170] sm:$0xff]
        %v457 = vld [vmem:[%s300 + $0x178] sm:$0xff]
        %v458 = vld [vmem:[%s300 + $0x180] sm:$0xff]
        %v459 = vld [vmem:[%s300 + $0x188] sm:$0xff]
        %v460 = vld [vmem:[%s300 + $0x190] sm:$0xff]
        %v461 = vld [vmem:[%s300 + $0x198] sm:$0xff]
        %v462 = vld [vmem:[%s300 + $0x1a0] sm:$0xff]
        %v463 = vld [vmem:[%s300 + $0x1a8] sm:$0xff]
        %v464 = vld [vmem:[%s300 + $0x1b0] sm:$0xff]
        %v465 = vld [vmem:[%s300 + $0x1b8] sm:$0xff]
        %v466 = vld [vmem:[%s300 + $0x1c0] sm:$0xff]
        %v467 = vld [vmem:[%s300 + $0x1c8] sm:$0xff]
        %v468 = vld [vmem:[%s300 + $0x1d0] sm:$0xff]
        %v469 = vld [vmem:[%s300 + $0x1d8] sm:$0xff]
        %v470 = vld [vmem:[%s300 + $0x1e0] sm:$0xff]
        %v471 = vld [vmem:[%s300 + $0x1e8] sm:$0xff]
        %v472 = vld [vmem:[%s300 + $0x1f0] sm:$0xff]
        %v473 = vld [vmem:[%s300 + $0x1f8] sm:$0xff]
        %474 = vmatprep.subr.mxu0 %v411
        %475 = vmatpush1.msra.mxu0 %v410
        %476 = vmatprep.subr.mxu0 %v413
        %477 = vmatpush1.msra.mxu0 %v412
        %478 = vmatprep.subr.mxu0 %v415
        %479 = vmatpush1.msra.mxu0 %v414
        %480 = vmatprep.subr.mxu0 %v417
        %481 = vmatpush1.msra.mxu0 %v416
        %482 = vmatprep.subr.mxu0 %v419
        %483 = vmatpush1.msra.mxu0 %v418
        %484 = vmatprep.subr.mxu0 %v421
        %485 = vmatpush1.msra.mxu0 %v420
        %486 = vmatprep.subr.mxu0 %v423
        %487 = vmatpush1.msra.mxu0 %v422
        %488 = vmatprep.subr.mxu0 %v425
        %489 = vmatpush1.msra.mxu0 %v424
        %490 = vmatprep.subr.mxu0 %v427
        %491 = vmatpush1.msra.mxu0 %v426
        %492 = vmatprep.subr.mxu0 %v429
        %493 = vmatpush1.msra.mxu0 %v428
        %494 = vmatprep.subr.mxu0 %v431
        %495 = vmatpush1.msra.mxu0 %v430
        %496 = vmatprep.subr.mxu0 %v433
        %497 = vmatpush1.msra.mxu0 %v432
        %498 = vmatprep.subr.mxu0 %v435
        %499 = vmatpush1.msra.mxu0 %v434
        %500 = vmatprep.subr.mxu0 %v437
        %501 = vmatpush1.msra.mxu0 %v436
        %502 = vmatprep.subr.mxu0 %v439
        %503 = vmatpush1.msra.mxu0 %v438
        %504 = vmatprep.subr.mxu0 %v441
        %505 = vmatpush1.msra.mxu0 %v440
        %506 = vmatprep.subr.mxu0 %v443
        %507 = vmatpush1.msra.mxu0 %v442
        %508 = vmatprep.subr.mxu0 %v445
        %509 = vmatpush1.msra.mxu0 %v444
        %510 = vmatprep.subr.mxu0 %v447
        %511 = vmatpush1.msra.mxu0 %v446
        %512 = vmatprep.subr.mxu0 %v449
        %513 = vmatpush1.msra.mxu0 %v448
        %514 = vmatprep.subr.mxu0 %v451
        %515 = vmatpush1.msra.mxu0 %v450
        %516 = vmatprep.subr.mxu0 %v453
        %517 = vmatpush1.msra.mxu0 %v452
        %518 = vmatprep.subr.mxu0 %v455
        %519 = vmatpush1.msra.mxu0 %v454
        %520 = vmatprep.subr.mxu0 %v457
        %521 = vmatpush1.msra.mxu0 %v456
        %522 = vmatprep.subr.mxu0 %v459
        %523 = vmatpush1.msra.mxu0 %v458
        %524 = vmatprep.subr.mxu0 %v461
        %525 = vmatpush1.msra.mxu0 %v460
        %526 = vmatprep.subr.mxu0 %v463
        %527 = vmatpush1.msra.mxu0 %v462
        %528 = vmatprep.subr.mxu0 %v465
        %529 = vmatpush1.msra.mxu0 %v464
        %530 = vmatprep.subr.mxu0 %v467
        %531 = vmatpush1.msra.mxu0 %v466
        %532 = vmatprep.subr.mxu0 %v469
        %533 = vmatpush1.msra.mxu0 %v468
        %534 = vmatprep.subr.mxu0 %v471
        %535 = vmatpush1.msra.mxu0 %v470
        %536 = vmatprep.subr.mxu0 %v473
        %537 = vmatpush1.msra.mxu0 %v472
        %538 = vmatprep.mubr.f32.mxu0 %v379
        %539 = vmatmul.mubr.f32.gmra.mrb[0].mxu0 %v378
        %v540 = vpop.f32.mrb[0].mxu0
        %v541 = vadd.f32 0.0, %v540
        %v542 = vpop.f32.mrb[0].mxu0
        %v543 = vadd.f32 0.0, %v542
        %544 = vmatprep.mubr.f32.mxu0 %v381
        %545 = vmatmul.mubr.f32.gmra.mrb[0].mxu0 %v380
        %v546 = vpop.f32.mrb[0].mxu0
        %v547 = vadd.f32 0.0, %v546
        %v548 = vpop.f32.mrb[0].mxu0
        %v549 = vadd.f32 0.0, %v548
        %550 = vmatprep.mubr.f32.mxu0 %v383
        %551 = vmatmul.mubr.f32.gmra.mrb[0].mxu0 %v382
        %v552 = vpop.f32.mrb[0].mxu0
        %v553 = vadd.f32 0.0, %v552
        %v554 = vpop.f32.mrb[0].mxu0
        %v555 = vadd.f32 0.0, %v554
        %556 = vmatprep.mubr.f32.mxu0 %v385
        %557 = vmatmul.mubr.f32.gmra.mrb[0].mxu0 %v384
        %v558 = vpop.f32.mrb[0].mxu0
        %v559 = vadd.f32 0.0, %v558
        %v560 = vpop.f32.mrb[0].mxu0
        %v561 = vadd.f32 0.0, %v560
        %562 = vmatprep.mubr.f32.mxu0 %v387
        %563 = vmatmul.mubr.f32.gmra.mrb[0].mxu0 %v386
        %v564 = vpop.f32.mrb[0].mxu0
        %v565 = vadd.f32 0.0, %v564
        %v566 = vpop.f32.mrb[0].mxu0
        %v567 = vadd.f32 0.0, %v566
        %568 = vmatprep.mubr.f32.mxu0 %v389
        %569 = vmatmul.mubr.f32.gmra.mrb[0].mxu0 %v388
        %v570 = vpop.f32.mrb[0].mxu0
        %v571 = vadd.f32 0.0, %v570
        %v572 = vpop.f32.mrb[0].mxu0
        %v573 = vadd.f32 0.0, %v572
        %574 = vmatprep.mubr.f32.mxu0 %v391
        %575 = vmatmul.mubr.f32.gmra.mrb[0].mxu0 %v390
        %v576 = vpop.f32.mrb[0].mxu0
        %v577 = vadd.f32 0.0, %v576
        %v578 = vpop.f32.mrb[0].mxu0
        %v579 = vadd.f32 0.0, %v578
        %580 = vmatprep.mubr.f32.mxu0 %v393
        %581 = vmatmul.mubr.f32.gmra.mrb[0].mxu0 %v392
        %v582 = vpop.f32.mrb[0].mxu0
        %v583 = vadd.f32 0.0, %v582
        %v584 = vpop.f32.mrb[0].mxu0
        %v585 = vadd.f32 0.0, %v584
        %586 = vmatprep.mubr.f32.mxu0 %v395
        %587 = vmatmul.mubr.f32.gmra.mrb[0].mxu0 %v394
        %v588 = vpop.f32.mrb[0].mxu0
        %v589 = vadd.f32 0.0, %v588
        %v590 = vpop.f32.mrb[0].mxu0
        %v591 = vadd.f32 0.0, %v590
        %592 = vmatprep.mubr.f32.mxu0 %v397
        %593 = vmatmul.mubr.f32.gmra.mrb[0].mxu0 %v396
        %v594 = vpop.f32.mrb[0].mxu0
        %v595 = vadd.f32 0.0, %v594
        %v596 = vpop.f32.mrb[0].mxu0
        %v597 = vadd.f32 0.0, %v596
        %598 = vmatprep.mubr.f32.mxu0 %v399
        %599 = vmatmul.mubr.f32.gmra.mrb[0].mxu0 %v398
        %v600 = vpop.f32.mrb[0].mxu0
        %v601 = vadd.f32 0.0, %v600
        %v602 = vpop.f32.mrb[0].mxu0
        %v603 = vadd.f32 0.0, %v602
        %604 = vmatprep.mubr.f32.mxu0 %v401
        %605 = vmatmul.mubr.f32.gmra.mrb[0].mxu0 %v400
        %v606 = vpop.f32.mrb[0].mxu0
        %v607 = vadd.f32 0.0, %v606
        %v608 = vpop.f32.mrb[0].mxu0
        %v609 = vadd.f32 0.0, %v608
        %610 = vmatprep.mubr.f32.mxu0 %v403
        %611 = vmatmul.mubr.f32.gmra.mrb[0].mxu0 %v402
        %v612 = vpop.f32.mrb[0].mxu0
        %v613 = vadd.f32 0.0, %v612
        %v614 = vpop.f32.mrb[0].mxu0
        %v615 = vadd.f32 0.0, %v614
        %616 = vmatprep.mubr.f32.mxu0 %v405
        %617 = vmatmul.mubr.f32.gmra.mrb[0].mxu0 %v404
        %v618 = vpop.f32.mrb[0].mxu0
        %v619 = vadd.f32 0.0, %v618
        %v620 = vpop.f32.mrb[0].mxu0
        %v621 = vadd.f32 0.0, %v620
        %622 = vmatprep.mubr.f32.mxu0 %v407
        %623 = vmatmul.mubr.f32.gmra.mrb[0].mxu0 %v406
        %v624 = vpop.f32.mrb[0].mxu0
        %v625 = vadd.f32 0.0, %v624
        %v626 = vpop.f32.mrb[0].mxu0
        %v627 = vadd.f32 0.0, %v626
        %628 = vmatprep.mubr.f32.mxu0 %v409
        %629 = vmatmul.mubr.f32.gmra.mrb[0].mxu0 %v408
        %v630 = vpop.f32.mrb[0].mxu0
        %v631 = vadd.f32 0.0, %v630
        %v632 = vpop.f32.mrb[0].mxu0
        %v633 = vadd.f32 0.0, %v632
        %634 = vdwg.mxu0
        // Predicated region
        $region57: #{adapter_forward.1} parent=35 // pred_check
          %p635 = pneg %p365
        $region58: #{adapter_forward.1} parent=35 // pred_check_branch
          %637 = sbr.rel (%p635) target = $region60
        $region59: #{adapter_forward.1} parent=35 // pred_region
          %s638 = sshra.s32 %s377, 3
          %s639 = sand.u32 %s377, 7
          %s640 = smul.u32 %s638, 2
          %s641 = smul.addr %s640, 8
          %s642 = scalar_lea.vmem %s357, %s641 [#allocation12]
          %643 = vst [vmem:[%s642] sm:$0xff] %v541
          %644 = vst [vmem:[%s642 + $0x8] sm:$0xff] %v543
          %645 = vst [vmem:[%s642 + $0x10] sm:$0xff] %v547
          %646 = vst [vmem:[%s642 + $0x18] sm:$0xff] %v549
          %647 = vst [vmem:[%s642 + $0x20] sm:$0xff] %v553
          %648 = vst [vmem:[%s642 + $0x28] sm:$0xff] %v555
          %649 = vst [vmem:[%s642 + $0x30] sm:$0xff] %v559
          %650 = vst [vmem:[%s642 + $0x38] sm:$0xff] %v561
          %651 = vst [vmem:[%s642 + $0x40] sm:$0xff] %v565
          %652 = vst [vmem:[%s642 + $0x48] sm:$0xff] %v567
          %653 = vst [vmem:[%s642 + $0x50] sm:$0xff] %v571
          %654 = vst [vmem:[%s642 + $0x58] sm:$0xff] %v573
          %655 = vst [vmem:[%s642 + $0x60] sm:$0xff] %v577
          %656 = vst [vmem:[%s642 + $0x68] sm:$0xff] %v579
          %657 = vst [vmem:[%s642 + $0x70] sm:$0xff] %v583
          %658 = vst [vmem:[%s642 + $0x78] sm:$0xff] %v585
          %659 = vst [vmem:[%s642 + $0x80] sm:$0xff] %v589
          %660 = vst [vmem:[%s642 + $0x88] sm:$0xff] %v591
          %661 = vst [vmem:[%s642 + $0x90] sm:$0xff] %v595
          %662 = vst [vmem:[%s642 + $0x98] sm:$0xff] %v597
          %663 = vst [vmem:[%s642 + $0xa0] sm:$0xff] %v601
          %664 = vst [vmem:[%s642 + $0xa8] sm:$0xff] %v603
          %665 = vst [vmem:[%s642 + $0xb0] sm:$0xff] %v607
          %666 = vst [vmem:[%s642 + $0xb8] sm:$0xff] %v609
          %667 = vst [vmem:[%s642 + $0xc0] sm:$0xff] %v613
          %668 = vst [vmem:[%s642 + $0xc8] sm:$0xff] %v615
          %669 = vst [vmem:[%s642 + $0xd0] sm:$0xff] %v619
          %670 = vst [vmem:[%s642 + $0xd8] sm:$0xff] %v621
          %671 = vst [vmem:[%s642 + $0xe0] sm:$0xff] %v625
          %672 = vst [vmem:[%s642 + $0xe8] sm:$0xff] %v627
          %673 = vst [vmem:[%s642 + $0xf0] sm:$0xff] %v631
          %674 = vst [vmem:[%s642 + $0xf8] sm:$0xff] %v633
        $region60: #{adapter_forward.1} parent=35 // pred_fallthru
          _
        %p675 = scmp.gt.s32.totalorder %s33, 0
        %p676 = scmp.lt.s32.totalorder %s33, 2
        %p677 = pnand %p675, %p676
        %p678 = pneg %p677
        // Predicated region
        $region61: #{adapter_forward.1} parent=35 // pred_check
          _
        $region62: #{adapter_forward.1} parent=35 // pred_check_branch
          %680 = sbr.rel (%p677) target = $region64
        $region63: #{adapter_forward.1} parent=35 // pred_region
          %s681 = sshra.s32 %s377, 3
          %s682 = sand.u32 %s377, 7
          %s683 = smul.u32 %s681, 2
          %s684 = smul.addr %s683, 8
          %s685 = scalar_lea.vmem %s357, %s684 [#allocation12]
          %v686 = vld [vmem:[%s685] sm:$0xff]
          %v687 = vld [vmem:[%s685 + $0x8] sm:$0xff]
          %v688 = vld [vmem:[%s685 + $0x10] sm:$0xff]
          %v689 = vld [vmem:[%s685 + $0x18] sm:$0xff]
          %v690 = vld [vmem:[%s685 + $0x20] sm:$0xff]
          %v691 = vld [vmem:[%s685 + $0x28] sm:$0xff]
          %v692 = vld [vmem:[%s685 + $0x30] sm:$0xff]
          %v693 = vld [vmem:[%s685 + $0x38] sm:$0xff]
          %v694 = vld [vmem:[%s685 + $0x40] sm:$0xff]
          %v695 = vld [vmem:[%s685 + $0x48] sm:$0xff]
          %v696 = vld [vmem:[%s685 + $0x50] sm:$0xff]
          %v697 = vld [vmem:[%s685 + $0x58] sm:$0xff]
          %v698 = vld [vmem:[%s685 + $0x60] sm:$0xff]
          %v699 = vld [vmem:[%s685 + $0x68] sm:$0xff]
          %v700 = vld [vmem:[%s685 + $0x70] sm:$0xff]
          %v701 = vld [vmem:[%s685 + $0x78] sm:$0xff]
          %v702 = vld [vmem:[%s685 + $0x80] sm:$0xff]
          %v703 = vld [vmem:[%s685 + $0x88] sm:$0xff]
          %v704 = vld [vmem:[%s685 + $0x90] sm:$0xff]
          %v705 = vld [vmem:[%s685 + $0x98] sm:$0xff]
          %v706 = vld [vmem:[%s685 + $0xa0] sm:$0xff]
          %v707 = vld [vmem:[%s685 + $0xa8] sm:$0xff]
          %v708 = vld [vmem:[%s685 + $0xb0] sm:$0xff]
          %v709 = vld [vmem:[%s685 + $0xb8] sm:$0xff]
          %v710 = vld [vmem:[%s685 + $0xc0] sm:$0xff]
          %v711 = vld [vmem:[%s685 + $0xc8] sm:$0xff]
          %v712 = vld [vmem:[%s685 + $0xd0] sm:$0xff]
          %v713 = vld [vmem:[%s685 + $0xd8] sm:$0xff]
          %v714 = vld [vmem:[%s685 + $0xe0] sm:$0xff]
          %v715 = vld [vmem:[%s685 + $0xe8] sm:$0xff]
          %v716 = vld [vmem:[%s685 + $0xf0] sm:$0xff]
          %v717 = vld [vmem:[%s685 + $0xf8] sm:$0xff]
          %v718 = vadd.f32 %v686, %v541
          %v719 = vadd.f32 %v687, %v543
          %v720 = vadd.f32 %v688, %v547
          %v721 = vadd.f32 %v689, %v549
          %v722 = vadd.f32 %v690, %v553
          %v723 = vadd.f32 %v691, %v555
          %v724 = vadd.f32 %v692, %v559
          %v725 = vadd.f32 %v693, %v561
          %v726 = vadd.f32 %v694, %v565
          %v727 = vadd.f32 %v695, %v567
          %v728 = vadd.f32 %v696, %v571
          %v729 = vadd.f32 %v697, %v573
          %v730 = vadd.f32 %v698, %v577
          %v731 = vadd.f32 %v699, %v579
          %v732 = vadd.f32 %v700, %v583
          %v733 = vadd.f32 %v701, %v585
          %v734 = vadd.f32 %v702, %v589
          %v735 = vadd.f32 %v703, %v591
          %v736 = vadd.f32 %v704, %v595
          %v737 = vadd.f32 %v705, %v597
          %v738 = vadd.f32 %v706, %v601
          %v739 = vadd.f32 %v707, %v603
          %v740 = vadd.f32 %v708, %v607
          %v741 = vadd.f32 %v709, %v609
          %v742 = vadd.f32 %v710, %v613
          %v743 = vadd.f32 %v711, %v615
          %v744 = vadd.f32 %v712, %v619
          %v745 = vadd.f32 %v713, %v621
          %v746 = vadd.f32 %v714, %v625
          %v747 = vadd.f32 %v715, %v627
          %v748 = vadd.f32 %v716, %v631
          %v749 = vadd.f32 %v717, %v633
          %750 = vst [vmem:[%s685] sm:$0xff] %v718
          %751 = vst [vmem:[%s685 + $0x8] sm:$0xff] %v719
          %752 = vst [vmem:[%s685 + $0x10] sm:$0xff] %v720
          %753 = vst [vmem:[%s685 + $0x18] sm:$0xff] %v721
          %754 = vst [vmem:[%s685 + $0x20] sm:$0xff] %v722
          %755 = vst [vmem:[%s685 + $0x28] sm:$0xff] %v723
          %756 = vst [vmem:[%s685 + $0x30] sm:$0xff] %v724
          %757 = vst [vmem:[%s685 + $0x38] sm:$0xff] %v725
          %758 = vst [vmem:[%s685 + $0x40] sm:$0xff] %v726
          %759 = vst [vmem:[%s685 + $0x48] sm:$0xff] %v727
          %760 = vst [vmem:[%s685 + $0x50] sm:$0xff] %v728
          %761 = vst [vmem:[%s685 + $0x58] sm:$0xff] %v729
          %762 = vst [vmem:[%s685 + $0x60] sm:$0xff] %v730
          %763 = vst [vmem:[%s685 + $0x68] sm:$0xff] %v731
          %764 = vst [vmem:[%s685 + $0x70] sm:$0xff] %v732
          %765 = vst [vmem:[%s685 + $0x78] sm:$0xff] %v733
          %766 = vst [vmem:[%s685 + $0x80] sm:$0xff] %v734
          %767 = vst [vmem:[%s685 + $0x88] sm:$0xff] %v735
          %768 = vst [vmem:[%s685 + $0x90] sm:$0xff] %v736
          %769 = vst [vmem:[%s685 + $0x98] sm:$0xff] %v737
          %770 = vst [vmem:[%s685 + $0xa0] sm:$0xff] %v738
          %771 = vst [vmem:[%s685 + $0xa8] sm:$0xff] %v739
          %772 = vst [vmem:[%s685 + $0xb0] sm:$0xff] %v740
          %773 = vst [vmem:[%s685 + $0xb8] sm:$0xff] %v741
          %774 = vst [vmem:[%s685 + $0xc0] sm:$0xff] %v742
          %775 = vst [vmem:[%s685 + $0xc8] sm:$0xff] %v743
          %776 = vst [vmem:[%s685 + $0xd0] sm:$0xff] %v744
          %777 = vst [vmem:[%s685 + $0xd8] sm:$0xff] %v745
          %778 = vst [vmem:[%s685 + $0xe0] sm:$0xff] %v746
          %779 = vst [vmem:[%s685 + $0xe8] sm:$0xff] %v747
          %780 = vst [vmem:[%s685 + $0xf0] sm:$0xff] %v748
          %781 = vst [vmem:[%s685 + $0xf8] sm:$0xff] %v749
        $region64: #{adapter_forward.1} parent=35 // pred_fallthru
          _
        %p782 = scmp.eq.s32.totalorder %s33, 2
        // Predicated region
        $region65: #{adapter_forward.1} parent=35 // pred_check
          %p783 = pneg %p782
        $region66: #{adapter_forward.1} parent=35 // pred_check_branch
          %785 = sbr.rel (%p783) target = $region68
        $region67: #{adapter_forward.1} parent=35 // pred_region
          %s786 = sshra.s32 %s377, 3
          %s787 = sand.u32 %s377, 7
          %s788 = smul.u32 %s786, 2
          %s789 = smul.addr %s788, 8
          %s790 = scalar_lea.vmem %s357, %s789 [#allocation12]
          %v791 = vld [vmem:[%s790] sm:$0xff]
          %v792 = vld [vmem:[%s790 + $0x8] sm:$0xff]
          %v793 = vld [vmem:[%s790 + $0x10] sm:$0xff]
          %v794 = vld [vmem:[%s790 + $0x18] sm:$0xff]
          %v795 = vld [vmem:[%s790 + $0x20] sm:$0xff]
          %v796 = vld [vmem:[%s790 + $0x28] sm:$0xff]
          %v797 = vld [vmem:[%s790 + $0x30] sm:$0xff]
          %v798 = vld [vmem:[%s790 + $0x38] sm:$0xff]
          %v799 = vld [vmem:[%s790 + $0x40] sm:$0xff]
          %v800 = vld [vmem:[%s790 + $0x48] sm:$0xff]
          %v801 = vld [vmem:[%s790 + $0x50] sm:$0xff]
          %v802 = vld [vmem:[%s790 + $0x58] sm:$0xff]
          %v803 = vld [vmem:[%s790 + $0x60] sm:$0xff]
          %v804 = vld [vmem:[%s790 + $0x68] sm:$0xff]
          %v805 = vld [vmem:[%s790 + $0x70] sm:$0xff]
          %v806 = vld [vmem:[%s790 + $0x78] sm:$0xff]
          %v807 = vld [vmem:[%s790 + $0x80] sm:$0xff]
          %v808 = vld [vmem:[%s790 + $0x88] sm:$0xff]
          %v809 = vld [vmem:[%s790 + $0x90] sm:$0xff]
          %v810 = vld [vmem:[%s790 + $0x98] sm:$0xff]
          %v811 = vld [vmem:[%s790 + $0xa0] sm:$0xff]
          %v812 = vld [vmem:[%s790 + $0xa8] sm:$0xff]
          %v813 = vld [vmem:[%s790 + $0xb0] sm:$0xff]
          %v814 = vld [vmem:[%s790 + $0xb8] sm:$0xff]
          %v815 = vld [vmem:[%s790 + $0xc0] sm:$0xff]
          %v816 = vld [vmem:[%s790 + $0xc8] sm:$0xff]
          %v817 = vld [vmem:[%s790 + $0xd0] sm:$0xff]
          %v818 = vld [vmem:[%s790 + $0xd8] sm:$0xff]
          %v819 = vld [vmem:[%s790 + $0xe0] sm:$0xff]
          %v820 = vld [vmem:[%s790 + $0xe8] sm:$0xff]
          %v821 = vld [vmem:[%s790 + $0xf0] sm:$0xff]
          %v822 = vld [vmem:[%s790 + $0xf8] sm:$0xff]
          %v823 = vadd.f32 %v791, %v541
          %v824 = vadd.f32 %v792, %v543
          %v825 = vadd.f32 %v793, %v547
          %v826 = vadd.f32 %v794, %v549
          %v827 = vadd.f32 %v795, %v553
          %v828 = vadd.f32 %v796, %v555
          %v829 = vadd.f32 %v797, %v559
          %v830 = vadd.f32 %v798, %v561
          %v831 = vadd.f32 %v799, %v565
          %v832 = vadd.f32 %v800, %v567
          %v833 = vadd.f32 %v801, %v571
          %v834 = vadd.f32 %v802, %v573
          %v835 = vadd.f32 %v803, %v577
          %v836 = vadd.f32 %v804, %v579
          %v837 = vadd.f32 %v805, %v583
          %v838 = vadd.f32 %v806, %v585
          %v839 = vadd.f32 %v807, %v589
          %v840 = vadd.f32 %v808, %v591
          %v841 = vadd.f32 %v809, %v595
          %v842 = vadd.f32 %v810, %v597
          %v843 = vadd.f32 %v811, %v601
          %v844 = vadd.f32 %v812, %v603
          %v845 = vadd.f32 %v813, %v607
          %v846 = vadd.f32 %v814, %v609
          %v847 = vadd.f32 %v815, %v613
          %v848 = vadd.f32 %v816, %v615
          %v849 = vadd.f32 %v817, %v619
          %v850 = vadd.f32 %v818, %v621
          %v851 = vadd.f32 %v819, %v625
          %v852 = vadd.f32 %v820, %v627
          %v853 = vadd.f32 %v821, %v631
          %v854 = vadd.f32 %v822, %v633
          %855 = vst [vmem:[%s790] sm:$0xff] %v823
          %856 = vst [vmem:[%s790 + $0x8] sm:$0xff] %v824
          %857 = vst [vmem:[%s790 + $0x10] sm:$0xff] %v825
          %858 = vst [vmem:[%s790 + $0x18] sm:$0xff] %v826
          %859 = vst [vmem:[%s790 + $0x20] sm:$0xff] %v827
          %860 = vst [vmem:[%s790 + $0x28] sm:$0xff] %v828
          %861 = vst [vmem:[%s790 + $0x30] sm:$0xff] %v829
          %862 = vst [vmem:[%s790 + $0x38] sm:$0xff] %v830
          %863 = vst [vmem:[%s790 + $0x40] sm:$0xff] %v831
          %864 = vst [vmem:[%s790 + $0x48] sm:$0xff] %v832
          %865 = vst [vmem:[%s790 + $0x50] sm:$0xff] %v833
          %866 = vst [vmem:[%s790 + $0x58] sm:$0xff] %v834
          %867 = vst [vmem:[%s790 + $0x60] sm:$0xff] %v835
          %868 = vst [vmem:[%s790 + $0x68] sm:$0xff] %v836
          %869 = vst [vmem:[%s790 + $0x70] sm:$0xff] %v837
          %870 = vst [vmem:[%s790 + $0x78] sm:$0xff] %v838
          %871 = vst [vmem:[%s790 + $0x80] sm:$0xff] %v839
          %872 = vst [vmem:[%s790 + $0x88] sm:$0xff] %v840
          %873 = vst [vmem:[%s790 + $0x90] sm:$0xff] %v841
          %874 = vst [vmem:[%s790 + $0x98] sm:$0xff] %v842
          %875 = vst [vmem:[%s790 + $0xa0] sm:$0xff] %v843
          %876 = vst [vmem:[%s790 + $0xa8] sm:$0xff] %v844
          %877 = vst [vmem:[%s790 + $0xb0] sm:$0xff] %v845
          %878 = vst [vmem:[%s790 + $0xb8] sm:$0xff] %v846
          %879 = vst [vmem:[%s790 + $0xc0] sm:$0xff] %v847
          %880 = vst [vmem:[%s790 + $0xc8] sm:$0xff] %v848
          %881 = vst [vmem:[%s790 + $0xd0] sm:$0xff] %v849
          %882 = vst [vmem:[%s790 + $0xd8] sm:$0xff] %v850
          %883 = vst [vmem:[%s790 + $0xe0] sm:$0xff] %v851
          %884 = vst [vmem:[%s790 + $0xe8] sm:$0xff] %v852
          %885 = vst [vmem:[%s790 + $0xf0] sm:$0xff] %v853
          %886 = vst [vmem:[%s790 + $0xf8] sm:$0xff] %v854
          %v887 = vld [vmem:[#allocation2] sm:$0x3]
          %v888 = vadd.f32 %v823, %v825
          %v889 = vadd.f32 %v888, %v827
          %v890 = vadd.f32 %v889, %v829
          %v891 = vadd.f32 %v890, %v831
          %v892 = vadd.f32 %v891, %v833
          %v893 = vadd.f32 %v892, %v835
          %v894 = vadd.f32 %v893, %v837
          %v895 = vadd.f32 %v894, %v839
          %v896 = vadd.f32 %v895, %v841
          %v897 = vadd.f32 %v896, %v843
          %v898 = vadd.f32 %v897, %v845
          %v899 = vadd.f32 %v898, %v847
          %v900 = vadd.f32 %v899, %v849
          %v901 = vadd.f32 %v900, %v851
          %v902 = vadd.f32 %v901, %v853
          %v903 = vrot.slane %v902, 4
          %v904 = vadd.f32 %v902, %v903
          %v905 = vrot.slane %v904, 2
          %v906 = vadd.f32 %v904, %v905
          %v907 = vrot.slane %v906, 1
          %v908 = vadd.f32 %v906, %v907
          %v909 = vadd.f32 %v824, %v826
          %v910 = vadd.f32 %v909, %v828
          %v911 = vadd.f32 %v910, %v830
          %v912 = vadd.f32 %v911, %v832
          %v913 = vadd.f32 %v912, %v834
          %v914 = vadd.f32 %v913, %v836
          %v915 = vadd.f32 %v914, %v838
          %v916 = vadd.f32 %v915, %v840
          %v917 = vadd.f32 %v916, %v842
          %v918 = vadd.f32 %v917, %v844
          %v919 = vadd.f32 %v918, %v846
          %v920 = vadd.f32 %v919, %v848
          %v921 = vadd.f32 %v920, %v850
          %v922 = vadd.f32 %v921, %v852
          %v923 = vadd.f32 %v922, %v854
          %v924 = vrot.slane %v923, 4
          %v925 = vadd.f32 %v923, %v924
          %v926 = vrot.slane %v925, 2
          %v927 = vadd.f32 %v925, %v926
          %v928 = vrot.slane %v927, 1
          %v929 = vadd.f32 %v927, %v928
          %v932 = vcombine.low %v908, %v929
          %v934 = vunpack.c.l.s4 1966171168
          %v935 = vunpack.c.0.s8 %v934
          %v936 = vlaneseq
          %v937 = vshrl.u32 %v936, 7
          %v938 = vsub.s32 %v935, %v937
          %v939 = vrot.slane %v932, %v938
          %v941 = vunpack.c.l.s4 1966171168
          %v942 = vunpack.c.0.s8 %v941
          %v943 = vlaneseq
          %v944 = vshrl.u32 %v943, 7
          %v945 = vsub.s32 %v942, %v944
          %v946 = vrot.slane %v939, %v945
          %v948 = vadd.f32 %v887, %v946
          %v949 = vlaneseq
          %vm950 = vcmp.ge.s32.totalorder %v949, 0
          %vm951 = vcmp.lt.s32.totalorder %v949, 256
          %vm952 = vmand %vm950, %vm951
          %953 = vst.msk [vmem:[#allocation2] sm:$0x3] %vm952, %v948
          %v954 = vld [vmem:[#allocation3] sm:$0x3]
          %v955 = vmul.f32 %v823, %v823
          %v956 = vmul.f32 %v824, %v824
          %v957 = vmul.f32 %v825, %v825
          %v958 = vmul.f32 %v826, %v826
          %v959 = vmul.f32 %v827, %v827
          %v960 = vmul.f32 %v828, %v828
          %v961 = vmul.f32 %v829, %v829
          %v962 = vmul.f32 %v830, %v830
          %v963 = vmul.f32 %v831, %v831
          %v964 = vmul.f32 %v832, %v832
          %v965 = vmul.f32 %v833, %v833
          %v966 = vmul.f32 %v834, %v834
          %v967 = vmul.f32 %v835, %v835
          %v968 = vmul.f32 %v836, %v836
          %v969 = vmul.f32 %v837, %v837
          %v970 = vmul.f32 %v838, %v838
          %v971 = vmul.f32 %v839, %v839
          %v972 = vmul.f32 %v840, %v840
          %v973 = vmul.f32 %v841, %v841
          %v974 = vmul.f32 %v842, %v842
          %v975 = vmul.f32 %v843, %v843
          %v976 = vmul.f32 %v844, %v844
          %v977 = vmul.f32 %v845, %v845
          %v978 = vmul.f32 %v846, %v846
          %v979 = vmul.f32 %v847, %v847
          %v980 = vmul.f32 %v848, %v848
          %v981 = vmul.f32 %v849, %v849
          %v982 = vmul.f32 %v850, %v850
          %v983 = vmul.f32 %v851, %v851
          %v984 = vmul.f32 %v852, %v852
          %v985 = vmul.f32 %v853, %v853
          %v986 = vmul.f32 %v854, %v854
          %v987 = vadd.f32 %v955, %v957
          %v988 = vadd.f32 %v987, %v959
          %v989 = vadd.f32 %v988, %v961
          %v990 = vadd.f32 %v989, %v963
          %v991 = vadd.f32 %v990, %v965
          %v992 = vadd.f32 %v991, %v967
          %v993 = vadd.f32 %v992, %v969
          %v994 = vadd.f32 %v993, %v971
          %v995 = vadd.f32 %v994, %v973
          %v996 = vadd.f32 %v995, %v975
          %v997 = vadd.f32 %v996, %v977
          %v998 = vadd.f32 %v997, %v979
          %v999 = vadd.f32 %v998, %v981
          %v1000 = vadd.f32 %v999, %v983
          %v1001 = vadd.f32 %v1000, %v985
          %v1002 = vrot.slane %v1001, 4
          %v1003 = vadd.f32 %v1001, %v1002
          %v1004 = vrot.slane %v1003, 2
          %v1005 = vadd.f32 %v1003, %v1004
          %v1006 = vrot.slane %v1005, 1
          %v1007 = vadd.f32 %v1005, %v1006
          %v1008 = vadd.f32 %v956, %v958
          %v1009 = vadd.f32 %v1008, %v960
          %v1010 = vadd.f32 %v1009, %v962
          %v1011 = vadd.f32 %v1010, %v964
          %v1012 = vadd.f32 %v1011, %v966
          %v1013 = vadd.f32 %v1012, %v968
          %v1014 = vadd.f32 %v1013, %v970
          %v1015 = vadd.f32 %v1014, %v972
          %v1016 = vadd.f32 %v1015, %v974
          %v1017 = vadd.f32 %v1016, %v976
          %v1018 = vadd.f32 %v1017, %v978
          %v1019 = vadd.f32 %v1018, %v980
          %v1020 = vadd.f32 %v1019, %v982
          %v1021 = vadd.f32 %v1020, %v984
          %v1022 = vadd.f32 %v1021, %v986
          %v1023 = vrot.slane %v1022, 4
          %v1024 = vadd.f32 %v1022, %v1023
          %v1025 = vrot.slane %v1024, 2
          %v1026 = vadd.f32 %v1024, %v1025
          %v1027 = vrot.slane %v1026, 1
          %v1028 = vadd.f32 %v1026, %v1027
          %v1031 = vcombine.low %v1007, %v1028
          %v1033 = vunpack.c.l.s4 1966171168
          %v1034 = vunpack.c.0.s8 %v1033
          %v1035 = vlaneseq
          %v1036 = vshrl.u32 %v1035, 7
          %v1037 = vsub.s32 %v1034, %v1036
          %v1038 = vrot.slane %v1031, %v1037
          %v1040 = vunpack.c.l.s4 1966171168
          %v1041 = vunpack.c.0.s8 %v1040
          %v1042 = vlaneseq
          %v1043 = vshrl.u32 %v1042, 7
          %v1044 = vsub.s32 %v1041, %v1043
          %v1045 = vrot.slane %v1038, %v1044
          %v1047 = vadd.f32 %v954, %v1045
          %1048 = vst.msk [vmem:[#allocation3] sm:$0x3] %vm952, %v1047
        $region68: #{adapter_forward.1} parent=35 // pred_fallthru
          _
        %p1049 = scmp.eq.s32.totalorder %s34, 3
        %p1050 = pnand %p782, %p1049
        %p1051 = pneg %p1050
        // Predicated region
        $region69: #{adapter_forward.1} parent=35 // pred_check
          _
        $region70: #{adapter_forward.1} parent=35 // pred_check_branch
          %1053 = sbr.rel (%p1050) target = $region72
        $region71: #{adapter_forward.1} parent=35 // pred_region
          %v1054 = vld [vmem:[#allocation2] sm:$0x3]
          %v1055 = vmul.f32 %v1054, 0.001953125
          %v1056 = vld [vmem:[#allocation3] sm:$0x3]
          %v1057 = vmul.f32 %v1056, 0.001953125
          %v1058 = vmul.f32 %v1055, %v1055
          %v1059 = vsub.f32 %v1057, %v1058
          %v1060 = vmax.f32 %v1059, 0.0
          %v1061 = vadd.f32 %v1060, 1e-05
          %v1062 = vrsqrt.pop %v1061
          %v1063 = vld [vmem:[%s309] sm:$0x3]
          %v1064 = vmul.f32 %v1063, %v1062
          %v1065 = vld [vmem:[%s318] sm:$0x3]
          %v1066 = vmul.f32 %v1055, %v1064
          %v1067 = vsub.f32 %v1065, %v1066
          %v1068 = vld [vmem:[%s357] sm:$0xff]
          %v1069 = vld [vmem:[%s357 + $0x8] sm:$0xff]
          %v1070 = vld [vmem:[%s357 + $0x10] sm:$0xff]
          %v1071 = vld [vmem:[%s357 + $0x18] sm:$0xff]
          %v1072 = vld [vmem:[%s357 + $0x20] sm:$0xff]
          %v1073 = vld [vmem:[%s357 + $0x28] sm:$0xff]
          %v1074 = vld [vmem:[%s357 + $0x30] sm:$0xff]
          %v1075 = vld [vmem:[%s357 + $0x38] sm:$0xff]
          %v1076 = vld [vmem:[%s357 + $0x40] sm:$0xff]
          %v1077 = vld [vmem:[%s357 + $0x48] sm:$0xff]
          %v1078 = vld [vmem:[%s357 + $0x50] sm:$0xff]
          %v1079 = vld [vmem:[%s357 + $0x58] sm:$0xff]
          %v1080 = vld [vmem:[%s357 + $0x60] sm:$0xff]
          %v1081 = vld [vmem:[%s357 + $0x68] sm:$0xff]
          %v1082 = vld [vmem:[%s357 + $0x70] sm:$0xff]
          %v1083 = vld [vmem:[%s357 + $0x78] sm:$0xff]
          %v1084 = vld [vmem:[%s357 + $0x80] sm:$0xff]
          %v1085 = vld [vmem:[%s357 + $0x88] sm:$0xff]
          %v1086 = vld [vmem:[%s357 + $0x90] sm:$0xff]
          %v1087 = vld [vmem:[%s357 + $0x98] sm:$0xff]
          %v1088 = vld [vmem:[%s357 + $0xa0] sm:$0xff]
          %v1089 = vld [vmem:[%s357 + $0xa8] sm:$0xff]
          %v1090 = vld [vmem:[%s357 + $0xb0] sm:$0xff]
          %v1091 = vld [vmem:[%s357 + $0xb8] sm:$0xff]
          %v1092 = vld [vmem:[%s357 + $0xc0] sm:$0xff]
          %v1093 = vld [vmem:[%s357 + $0xc8] sm:$0xff]
          %v1094 = vld [vmem:[%s357 + $0xd0] sm:$0xff]
          %v1095 = vld [vmem:[%s357 + $0xd8] sm:$0xff]
          %v1096 = vld [vmem:[%s357 + $0xe0] sm:$0xff]
          %v1097 = vld [vmem:[%s357 + $0xe8] sm:$0xff]
          %v1098 = vld [vmem:[%s357 + $0xf0] sm:$0xff]
          %v1099 = vld [vmem:[%s357 + $0xf8] sm:$0xff]
          %v1100 = vld [vmem:[%s357 + $0x100] sm:$0xff]
          %v1101 = vld [vmem:[%s357 + $0x108] sm:$0xff]
          %v1102 = vld [vmem:[%s357 + $0x110] sm:$0xff]
          %v1103 = vld [vmem:[%s357 + $0x118] sm:$0xff]
          %v1104 = vld [vmem:[%s357 + $0x120] sm:$0xff]
          %v1105 = vld [vmem:[%s357 + $0x128] sm:$0xff]
          %v1106 = vld [vmem:[%s357 + $0x130] sm:$0xff]
          %v1107 = vld [vmem:[%s357 + $0x138] sm:$0xff]
          %v1108 = vld [vmem:[%s357 + $0x140] sm:$0xff]
          %v1109 = vld [vmem:[%s357 + $0x148] sm:$0xff]
          %v1110 = vld [vmem:[%s357 + $0x150] sm:$0xff]
          %v1111 = vld [vmem:[%s357 + $0x158] sm:$0xff]
          %v1112 = vld [vmem:[%s357 + $0x160] sm:$0xff]
          %v1113 = vld [vmem:[%s357 + $0x168] sm:$0xff]
          %v1114 = vld [vmem:[%s357 + $0x170] sm:$0xff]
          %v1115 = vld [vmem:[%s357 + $0x178] sm:$0xff]
          %v1116 = vld [vmem:[%s357 + $0x180] sm:$0xff]
          %v1117 = vld [vmem:[%s357 + $0x188] sm:$0xff]
          %v1118 = vld [vmem:[%s357 + $0x190] sm:$0xff]
          %v1119 = vld [vmem:[%s357 + $0x198] sm:$0xff]
          %v1120 = vld [vmem:[%s357 + $0x1a0] sm:$0xff]
          %v1121 = vld [vmem:[%s357 + $0x1a8] sm:$0xff]
          %v1122 = vld [vmem:[%s357 + $0x1b0] sm:$0xff]
          %v1123 = vld [vmem:[%s357 + $0x1b8] sm:$0xff]
          %v1124 = vld [vmem:[%s357 + $0x1c0] sm:$0xff]
          %v1125 = vld [vmem:[%s357 + $0x1c8] sm:$0xff]
          %v1126 = vld [vmem:[%s357 + $0x1d0] sm:$0xff]
          %v1127 = vld [vmem:[%s357 + $0x1d8] sm:$0xff]
          %v1128 = vld [vmem:[%s357 + $0x1e0] sm:$0xff]
          %v1129 = vld [vmem:[%s357 + $0x1e8] sm:$0xff]
          %v1130 = vld [vmem:[%s357 + $0x1f0] sm:$0xff]
          %v1131 = vld [vmem:[%s357 + $0x1f8] sm:$0xff]
          %v1132 = vld [vmem:[%s357 + $0x200] sm:$0xff]
          %v1133 = vld [vmem:[%s357 + $0x208] sm:$0xff]
          %v1134 = vld [vmem:[%s357 + $0x210] sm:$0xff]
          %v1135 = vld [vmem:[%s357 + $0x218] sm:$0xff]
          %v1136 = vld [vmem:[%s357 + $0x220] sm:$0xff]
          %v1137 = vld [vmem:[%s357 + $0x228] sm:$0xff]
          %v1138 = vld [vmem:[%s357 + $0x230] sm:$0xff]
          %v1139 = vld [vmem:[%s357 + $0x238] sm:$0xff]
          %v1140 = vld [vmem:[%s357 + $0x240] sm:$0xff]
          %v1141 = vld [vmem:[%s357 + $0x248] sm:$0xff]
          %v1142 = vld [vmem:[%s357 + $0x250] sm:$0xff]
          %v1143 = vld [vmem:[%s357 + $0x258] sm:$0xff]
          %v1144 = vld [vmem:[%s357 + $0x260] sm:$0xff]
          %v1145 = vld [vmem:[%s357 + $0x268] sm:$0xff]
          %v1146 = vld [vmem:[%s357 + $0x270] sm:$0xff]
          %v1147 = vld [vmem:[%s357 + $0x278] sm:$0xff]
          %v1148 = vld [vmem:[%s357 + $0x280] sm:$0xff]
          %v1149 = vld [vmem:[%s357 + $0x288] sm:$0xff]
          %v1150 = vld [vmem:[%s357 + $0x290] sm:$0xff]
          %v1151 = vld [vmem:[%s357 + $0x298] sm:$0xff]
          %v1152 = vld [vmem:[%s357 + $0x2a0] sm:$0xff]
          %v1153 = vld [vmem:[%s357 + $0x2a8] sm:$0xff]
          %v1154 = vld [vmem:[%s357 + $0x2b0] sm:$0xff]
          %v1155 = vld [vmem:[%s357 + $0x2b8] sm:$0xff]
          %v1156 = vld [vmem:[%s357 + $0x2c0] sm:$0xff]
          %v1157 = vld [vmem:[%s357 + $0x2c8] sm:$0xff]
          %v1158 = vld [vmem:[%s357 + $0x2d0] sm:$0xff]
          %v1159 = vld [vmem:[%s357 + $0x2d8] sm:$0xff]
          %v1160 = vld [vmem:[%s357 + $0x2e0] sm:$0xff]
          %v1161 = vld [vmem:[%s357 + $0x2e8] sm:$0xff]
          %v1162 = vld [vmem:[%s357 + $0x2f0] sm:$0xff]
          %v1163 = vld [vmem:[%s357 + $0x2f8] sm:$0xff]
          %v1164 = vld [vmem:[%s357 + $0x300] sm:$0xff]
          %v1165 = vld [vmem:[%s357 + $0x308] sm:$0xff]
          %v1166 = vld [vmem:[%s357 + $0x310] sm:$0xff]
          %v1167 = vld [vmem:[%s357 + $0x318] sm:$0xff]
          %v1168 = vld [vmem:[%s357 + $0x320] sm:$0xff]
          %v1169 = vld [vmem:[%s357 + $0x328] sm:$0xff]
          %v1170 = vld [vmem:[%s357 + $0x330] sm:$0xff]
          %v1171 = vld [vmem:[%s357 + $0x338] sm:$0xff]
          %v1172 = vld [vmem:[%s357 + $0x340] sm:$0xff]
          %v1173 = vld [vmem:[%s357 + $0x348] sm:$0xff]
          %v1174 = vld [vmem:[%s357 + $0x350] sm:$0xff]
          %v1175 = vld [vmem:[%s357 + $0x358] sm:$0xff]
          %v1176 = vld [vmem:[%s357 + $0x360] sm:$0xff]
          %v1177 = vld [vmem:[%s357 + $0x368] sm:$0xff]
          %v1178 = vld [vmem:[%s357 + $0x370] sm:$0xff]
          %v1179 = vld [vmem:[%s357 + $0x378] sm:$0xff]
          %v1180 = vld [vmem:[%s357 + $0x380] sm:$0xff]
          %v1181 = vld [vmem:[%s357 + $0x388] sm:$0xff]
          %v1182 = vld [vmem:[%s357 + $0x390] sm:$0xff]
          %v1183 = vld [vmem:[%s357 + $0x398] sm:$0xff]
          %v1184 = vld [vmem:[%s357 + $0x3a0] sm:$0xff]
          %v1185 = vld [vmem:[%s357 + $0x3a8] sm:$0xff]
          %v1186 = vld [vmem:[%s357 + $0x3b0] sm:$0xff]
          %v1187 = vld [vmem:[%s357 + $0x3b8] sm:$0xff]
          %v1188 = vld [vmem:[%s357 + $0x3c0] sm:$0xff]
          %v1189 = vld [vmem:[%s357 + $0x3c8] sm:$0xff]
          %v1190 = vld [vmem:[%s357 + $0x3d0] sm:$0xff]
          %v1191 = vld [vmem:[%s357 + $0x3d8] sm:$0xff]
          %v1192 = vld [vmem:[%s357 + $0x3e0] sm:$0xff]
          %v1193 = vld [vmem:[%s357 + $0x3e8] sm:$0xff]
          %v1194 = vld [vmem:[%s357 + $0x3f0] sm:$0xff]
          %v1195 = vld [vmem:[%s357 + $0x3f8] sm:$0xff]
          %v1197 = vlaneseq
          %v1198 = vshrl.u32 %v1197, 7
          %v1199 = vsub.s32 0, %v1198
          %v1200 = vrot.slane %v1064, %v1199
          %v1201 = vlaneseq
          %v1202 = vshrl.u32 %v1201, 7
          %v1203 = vsub.s32 1, %v1202
          %v1204 = vrot.slane %v1064, %v1203
          %v1207 = vmul.f32 %v1068, %v1200
          %v1208 = vmul.f32 %v1069, %v1204
          %v1209 = vmul.f32 %v1070, %v1200
          %v1210 = vmul.f32 %v1071, %v1204
          %v1211 = vmul.f32 %v1072, %v1200
          %v1212 = vmul.f32 %v1073, %v1204
          %v1213 = vmul.f32 %v1074, %v1200
          %v1214 = vmul.f32 %v1075, %v1204
          %v1215 = vmul.f32 %v1076, %v1200
          %v1216 = vmul.f32 %v1077, %v1204
          %v1217 = vmul.f32 %v1078, %v1200
          %v1218 = vmul.f32 %v1079, %v1204
          %v1219 = vmul.f32 %v1080, %v1200
          %v1220 = vmul.f32 %v1081, %v1204
          %v1221 = vmul.f32 %v1082, %v1200
          %v1222 = vmul.f32 %v1083, %v1204
          %v1223 = vmul.f32 %v1084, %v1200
          %v1224 = vmul.f32 %v1085, %v1204
          %v1225 = vmul.f32 %v1086, %v1200
          %v1226 = vmul.f32 %v1087, %v1204
          %v1227 = vmul.f32 %v1088, %v1200
          %v1228 = vmul.f32 %v1089, %v1204
          %v1229 = vmul.f32 %v1090, %v1200
          %v1230 = vmul.f32 %v1091, %v1204
          %v1231 = vmul.f32 %v1092, %v1200
          %v1232 = vmul.f32 %v1093, %v1204
          %v1233 = vmul.f32 %v1094, %v1200
          %v1234 = vmul.f32 %v1095, %v1204
          %v1235 = vmul.f32 %v1096, %v1200
          %v1236 = vmul.f32 %v1097, %v1204
          %v1237 = vmul.f32 %v1098, %v1200
          %v1238 = vmul.f32 %v1099, %v1204
          %v1239 = vmul.f32 %v1100, %v1200
          %v1240 = vmul.f32 %v1101, %v1204
          %v1241 = vmul.f32 %v1102, %v1200
          %v1242 = vmul.f32 %v1103, %v1204
          %v1243 = vmul.f32 %v1104, %v1200
          %v1244 = vmul.f32 %v1105, %v1204
          %v1245 = vmul.f32 %v1106, %v1200
          %v1246 = vmul.f32 %v1107, %v1204
          %v1247 = vmul.f32 %v1108, %v1200
          %v1248 = vmul.f32 %v1109, %v1204
          %v1249 = vmul.f32 %v1110, %v1200
          %v1250 = vmul.f32 %v1111, %v1204
          %v1251 = vmul.f32 %v1112, %v1200
          %v1252 = vmul.f32 %v1113, %v1204
          %v1253 = vmul.f32 %v1114, %v1200
          %v1254 = vmul.f32 %v1115, %v1204
          %v1255 = vmul.f32 %v1116, %v1200
          %v1256 = vmul.f32 %v1117, %v1204
          %v1257 = vmul.f32 %v1118, %v1200
          %v1258 = vmul.f32 %v1119, %v1204
          %v1259 = vmul.f32 %v1120, %v1200
          %v1260 = vmul.f32 %v1121, %v1204
          %v1261 = vmul.f32 %v1122, %v1200
          %v1262 = vmul.f32 %v1123, %v1204
          %v1263 = vmul.f32 %v1124, %v1200
          %v1264 = vmul.f32 %v1125, %v1204
          %v1265 = vmul.f32 %v1126, %v1200
          %v1266 = vmul.f32 %v1127, %v1204
          %v1267 = vmul.f32 %v1128, %v1200
          %v1268 = vmul.f32 %v1129, %v1204
          %v1269 = vmul.f32 %v1130, %v1200
          %v1270 = vmul.f32 %v1131, %v1204
          %v1271 = vmul.f32 %v1132, %v1200
          %v1272 = vmul.f32 %v1133, %v1204
          %v1273 = vmul.f32 %v1134, %v1200
          %v1274 = vmul.f32 %v1135, %v1204
          %v1275 = vmul.f32 %v1136, %v1200
          %v1276 = vmul.f32 %v1137, %v1204
          %v1277 = vmul.f32 %v1138, %v1200
          %v1278 = vmul.f32 %v1139, %v1204
          %v1279 = vmul.f32 %v1140, %v1200
          %v1280 = vmul.f32 %v1141, %v1204
          %v1281 = vmul.f32 %v1142, %v1200
          %v1282 = vmul.f32 %v1143, %v1204
          %v1283 = vmul.f32 %v1144, %v1200
          %v1284 = vmul.f32 %v1145, %v1204
          %v1285 = vmul.f32 %v1146, %v1200
          %v1286 = vmul.f32 %v1147, %v1204
          %v1287 = vmul.f32 %v1148, %v1200
          %v1288 = vmul.f32 %v1149, %v1204
          %v1289 = vmul.f32 %v1150, %v1200
          %v1290 = vmul.f32 %v1151, %v1204
          %v1291 = vmul.f32 %v1152, %v1200
          %v1292 = vmul.f32 %v1153, %v1204
          %v1293 = vmul.f32 %v1154, %v1200
          %v1294 = vmul.f32 %v1155, %v1204
          %v1295 = vmul.f32 %v1156, %v1200
          %v1296 = vmul.f32 %v1157, %v1204
          %v1297 = vmul.f32 %v1158, %v1200
          %v1298 = vmul.f32 %v1159, %v1204
          %v1299 = vmul.f32 %v1160, %v1200
          %v1300 = vmul.f32 %v1161, %v1204
          %v1301 = vmul.f32 %v1162, %v1200
          %v1302 = vmul.f32 %v1163, %v1204
          %v1303 = vmul.f32 %v1164, %v1200
          %v1304 = vmul.f32 %v1165, %v1204
          %v1305 = vmul.f32 %v1166, %v1200
          %v1306 = vmul.f32 %v1167, %v1204
          %v1307 = vmul.f32 %v1168, %v1200
          %v1308 = vmul.f32 %v1169, %v1204
          %v1309 = vmul.f32 %v1170, %v1200
          %v1310 = vmul.f32 %v1171, %v1204
          %v1311 = vmul.f32 %v1172, %v1200
          %v1312 = vmul.f32 %v1173, %v1204
          %v1313 = vmul.f32 %v1174, %v1200
          %v1314 = vmul.f32 %v1175, %v1204
          %v1315 = vmul.f32 %v1176, %v1200
          %v1316 = vmul.f32 %v1177, %v1204
          %v1317 = vmul.f32 %v1178, %v1200
          %v1318 = vmul.f32 %v1179, %v1204
          %v1319 = vmul.f32 %v1180, %v1200
          %v1320 = vmul.f32 %v1181, %v1204
          %v1321 = vmul.f32 %v1182, %v1200
          %v1322 = vmul.f32 %v1183, %v1204
          %v1323 = vmul.f32 %v1184, %v1200
          %v1324 = vmul.f32 %v1185, %v1204
          %v1325 = vmul.f32 %v1186, %v1200
          %v1326 = vmul.f32 %v1187, %v1204
          %v1327 = vmul.f32 %v1188, %v1200
          %v1328 = vmul.f32 %v1189, %v1204
          %v1329 = vmul.f32 %v1190, %v1200
          %v1330 = vmul.f32 %v1191, %v1204
          %v1331 = vmul.f32 %v1192, %v1200
          %v1332 = vmul.f32 %v1193, %v1204
          %v1333 = vmul.f32 %v1194, %v1200
          %v1334 = vmul.f32 %v1195, %v1204
          %v1336 = vlaneseq
          %v1337 = vshrl.u32 %v1336, 7
          %v1338 = vsub.s32 0, %v1337
          %v1339 = vrot.slane %v1067, %v1338
          %v1340 = vlaneseq
          %v1341 = vshrl.u32 %v1340, 7
          %v1342 = vsub.s32 1, %v1341
          %v1343 = vrot.slane %v1067, %v1342
          %v1346 = vadd.f32 %v1207, %v1339
          %v1347 = vadd.f32 %v1208, %v1343
          %v1348 = vadd.f32 %v1209, %v1339
          %v1349 = vadd.f32 %v1210, %v1343
          %v1350 = vadd.f32 %v1211, %v1339
          %v1351 = vadd.f32 %v1212, %v1343
          %v1352 = vadd.f32 %v1213, %v1339
          %v1353 = vadd.f32 %v1214, %v1343
          %v1354 = vadd.f32 %v1215, %v1339
          %v1355 = vadd.f32 %v1216, %v1343
          %v1356 = vadd.f32 %v1217, %v1339
          %v1357 = vadd.f32 %v1218, %v1343
          %v1358 = vadd.f32 %v1219, %v1339
          %v1359 = vadd.f32 %v1220, %v1343
          %v1360 = vadd.f32 %v1221, %v1339
          %v1361 = vadd.f32 %v1222, %v1343
          %v1362 = vadd.f32 %v1223, %v1339
          %v1363 = vadd.f32 %v1224, %v1343
          %v1364 = vadd.f32 %v1225, %v1339
          %v1365 = vadd.f32 %v1226, %v1343
          %v1366 = vadd.f32 %v1227, %v1339
          %v1367 = vadd.f32 %v1228, %v1343
          %v1368 = vadd.f32 %v1229, %v1339
          %v1369 = vadd.f32 %v1230, %v1343
          %v1370 = vadd.f32 %v1231, %v1339
          %v1371 = vadd.f32 %v1232, %v1343
          %v1372 = vadd.f32 %v1233, %v1339
          %v1373 = vadd.f32 %v1234, %v1343
          %v1374 = vadd.f32 %v1235, %v1339
          %v1375 = vadd.f32 %v1236, %v1343
          %v1376 = vadd.f32 %v1237, %v1339
          %v1377 = vadd.f32 %v1238, %v1343
          %v1378 = vadd.f32 %v1239, %v1339
          %v1379 = vadd.f32 %v1240, %v1343
          %v1380 = vadd.f32 %v1241, %v1339
          %v1381 = vadd.f32 %v1242, %v1343
          %v1382 = vadd.f32 %v1243, %v1339
          %v1383 = vadd.f32 %v1244, %v1343
          %v1384 = vadd.f32 %v1245, %v1339
          %v1385 = vadd.f32 %v1246, %v1343
          %v1386 = vadd.f32 %v1247, %v1339
          %v1387 = vadd.f32 %v1248, %v1343
          %v1388 = vadd.f32 %v1249, %v1339
          %v1389 = vadd.f32 %v1250, %v1343
          %v1390 = vadd.f32 %v1251, %v1339
          %v1391 = vadd.f32 %v1252, %v1343
          %v1392 = vadd.f32 %v1253, %v1339
          %v1393 = vadd.f32 %v1254, %v1343
          %v1394 = vadd.f32 %v1255, %v1339
          %v1395 = vadd.f32 %v1256, %v1343
          %v1396 = vadd.f32 %v1257, %v1339
          %v1397 = vadd.f32 %v1258, %v1343
          %v1398 = vadd.f32 %v1259, %v1339
          %v1399 = vadd.f32 %v1260, %v1343
          %v1400 = vadd.f32 %v1261, %v1339
          %v1401 = vadd.f32 %v1262, %v1343
          %v1402 = vadd.f32 %v1263, %v1339
          %v1403 = vadd.f32 %v1264, %v1343
          %v1404 = vadd.f32 %v1265, %v1339
          %v1405 = vadd.f32 %v1266, %v1343
          %v1406 = vadd.f32 %v1267, %v1339
          %v1407 = vadd.f32 %v1268, %v1343
          %v1408 = vadd.f32 %v1269, %v1339
          %v1409 = vadd.f32 %v1270, %v1343
          %v1410 = vadd.f32 %v1271, %v1339
          %v1411 = vadd.f32 %v1272, %v1343
          %v1412 = vadd.f32 %v1273, %v1339
          %v1413 = vadd.f32 %v1274, %v1343
          %v1414 = vadd.f32 %v1275, %v1339
          %v1415 = vadd.f32 %v1276, %v1343
          %v1416 = vadd.f32 %v1277, %v1339
          %v1417 = vadd.f32 %v1278, %v1343
          %v1418 = vadd.f32 %v1279, %v1339
          %v1419 = vadd.f32 %v1280, %v1343
          %v1420 = vadd.f32 %v1281, %v1339
          %v1421 = vadd.f32 %v1282, %v1343
          %v1422 = vadd.f32 %v1283, %v1339
          %v1423 = vadd.f32 %v1284, %v1343
          %v1424 = vadd.f32 %v1285, %v1339
          %v1425 = vadd.f32 %v1286, %v1343
          %v1426 = vadd.f32 %v1287, %v1339
          %v1427 = vadd.f32 %v1288, %v1343
          %v1428 = vadd.f32 %v1289, %v1339
          %v1429 = vadd.f32 %v1290, %v1343
          %v1430 = vadd.f32 %v1291, %v1339
          %v1431 = vadd.f32 %v1292, %v1343
          %v1432 = vadd.f32 %v1293, %v1339
          %v1433 = vadd.f32 %v1294, %v1343
          %v1434 = vadd.f32 %v1295, %v1339
          %v1435 = vadd.f32 %v1296, %v1343
          %v1436 = vadd.f32 %v1297, %v1339
          %v1437 = vadd.f32 %v1298, %v1343
          %v1438 = vadd.f32 %v1299, %v1339
          %v1439 = vadd.f32 %v1300, %v1343
          %v1440 = vadd.f32 %v1301, %v1339
          %v1441 = vadd.f32 %v1302, %v1343
          %v1442 = vadd.f32 %v1303, %v1339
          %v1443 = vadd.f32 %v1304, %v1343
          %v1444 = vadd.f32 %v1305, %v1339
          %v1445 = vadd.f32 %v1306, %v1343
          %v1446 = vadd.f32 %v1307, %v1339
          %v1447 = vadd.f32 %v1308, %v1343
          %v1448 = vadd.f32 %v1309, %v1339
          %v1449 = vadd.f32 %v1310, %v1343
          %v1450 = vadd.f32 %v1311, %v1339
          %v1451 = vadd.f32 %v1312, %v1343
          %v1452 = vadd.f32 %v1313, %v1339
          %v1453 = vadd.f32 %v1314, %v1343
          %v1454 = vadd.f32 %v1315, %v1339
          %v1455 = vadd.f32 %v1316, %v1343
          %v1456 = vadd.f32 %v1317, %v1339
          %v1457 = vadd.f32 %v1318, %v1343
          %v1458 = vadd.f32 %v1319, %v1339
          %v1459 = vadd.f32 %v1320, %v1343
          %v1460 = vadd.f32 %v1321, %v1339
          %v1461 = vadd.f32 %v1322, %v1343
          %v1462 = vadd.f32 %v1323, %v1339
          %v1463 = vadd.f32 %v1324, %v1343
          %v1464 = vadd.f32 %v1325, %v1339
          %v1465 = vadd.f32 %v1326, %v1343
          %v1466 = vadd.f32 %v1327, %v1339
          %v1467 = vadd.f32 %v1328, %v1343
          %v1468 = vadd.f32 %v1329, %v1339
          %v1469 = vadd.f32 %v1330, %v1343
          %v1470 = vadd.f32 %v1331, %v1339
          %v1471 = vadd.f32 %v1332, %v1343
          %v1472 = vadd.f32 %v1333, %v1339
          %v1473 = vadd.f32 %v1334, %v1343
          %v1474 = vmax.f32 %v1346, 0.0
          %v1475 = vmax.f32 %v1347, 0.0
          %v1476 = vmax.f32 %v1348, 0.0
          %v1477 = vmax.f32 %v1349, 0.0
          %v1478 = vmax.f32 %v1350, 0.0
          %v1479 = vmax.f32 %v1351, 0.0
          %v1480 = vmax.f32 %v1352, 0.0
          %v1481 = vmax.f32 %v1353, 0.0
          %v1482 = vmax.f32 %v1354, 0.0
          %v1483 = vmax.f32 %v1355, 0.0
          %v1484 = vmax.f32 %v1356, 0.0
          %v1485 = vmax.f32 %v1357, 0.0
          %v1486 = vmax.f32 %v1358, 0.0
          %v1487 = vmax.f32 %v1359, 0.0
          %v1488 = vmax.f32 %v1360, 0.0
          %v1489 = vmax.f32 %v1361, 0.0
          %v1490 = vmax.f32 %v1362, 0.0
          %v1491 = vmax.f32 %v1363, 0.0
          %v1492 = vmax.f32 %v1364, 0.0
          %v1493 = vmax.f32 %v1365, 0.0
          %v1494 = vmax.f32 %v1366, 0.0
          %v1495 = vmax.f32 %v1367, 0.0
          %v1496 = vmax.f32 %v1368, 0.0
          %v1497 = vmax.f32 %v1369, 0.0
          %v1498 = vmax.f32 %v1370, 0.0
          %v1499 = vmax.f32 %v1371, 0.0
          %v1500 = vmax.f32 %v1372, 0.0
          %v1501 = vmax.f32 %v1373, 0.0
          %v1502 = vmax.f32 %v1374, 0.0
          %v1503 = vmax.f32 %v1375, 0.0
          %v1504 = vmax.f32 %v1376, 0.0
          %v1505 = vmax.f32 %v1377, 0.0
          %v1506 = vmax.f32 %v1378, 0.0
          %v1507 = vmax.f32 %v1379, 0.0
          %v1508 = vmax.f32 %v1380, 0.0
          %v1509 = vmax.f32 %v1381, 0.0
          %v1510 = vmax.f32 %v1382, 0.0
          %v1511 = vmax.f32 %v1383, 0.0
          %v1512 = vmax.f32 %v1384, 0.0
          %v1513 = vmax.f32 %v1385, 0.0
          %v1514 = vmax.f32 %v1386, 0.0
          %v1515 = vmax.f32 %v1387, 0.0
          %v1516 = vmax.f32 %v1388, 0.0
          %v1517 = vmax.f32 %v1389, 0.0
          %v1518 = vmax.f32 %v1390, 0.0
          %v1519 = vmax.f32 %v1391, 0.0
          %v1520 = vmax.f32 %v1392, 0.0
          %v1521 = vmax.f32 %v1393, 0.0
          %v1522 = vmax.f32 %v1394, 0.0
          %v1523 = vmax.f32 %v1395, 0.0
          %v1524 = vmax.f32 %v1396, 0.0
          %v1525 = vmax.f32 %v1397, 0.0
          %v1526 = vmax.f32 %v1398, 0.0
          %v1527 = vmax.f32 %v1399, 0.0
          %v1528 = vmax.f32 %v1400, 0.0
          %v1529 = vmax.f32 %v1401, 0.0
          %v1530 = vmax.f32 %v1402, 0.0
          %v1531 = vmax.f32 %v1403, 0.0
          %v1532 = vmax.f32 %v1404, 0.0
          %v1533 = vmax.f32 %v1405, 0.0
          %v1534 = vmax.f32 %v1406, 0.0
          %v1535 = vmax.f32 %v1407, 0.0
          %v1536 = vmax.f32 %v1408, 0.0
          %v1537 = vmax.f32 %v1409, 0.0
          %v1538 = vmax.f32 %v1410, 0.0
          %v1539 = vmax.f32 %v1411, 0.0
          %v1540 = vmax.f32 %v1412, 0.0
          %v1541 = vmax.f32 %v1413, 0.0
          %v1542 = vmax.f32 %v1414, 0.0
          %v1543 = vmax.f32 %v1415, 0.0
          %v1544 = vmax.f32 %v1416, 0.0
          %v1545 = vmax.f32 %v1417, 0.0
          %v1546 = vmax.f32 %v1418, 0.0
          %v1547 = vmax.f32 %v1419, 0.0
          %v1548 = vmax.f32 %v1420, 0.0
          %v1549 = vmax.f32 %v1421, 0.0
          %v1550 = vmax.f32 %v1422, 0.0
          %v1551 = vmax.f32 %v1423, 0.0
          %v1552 = vmax.f32 %v1424, 0.0
          %v1553 = vmax.f32 %v1425, 0.0
          %v1554 = vmax.f32 %v1426, 0.0
          %v1555 = vmax.f32 %v1427, 0.0
          %v1556 = vmax.f32 %v1428, 0.0
          %v1557 = vmax.f32 %v1429, 0.0
          %v1558 = vmax.f32 %v1430, 0.0
          %v1559 = vmax.f32 %v1431, 0.0
          %v1560 = vmax.f32 %v1432, 0.0
          %v1561 = vmax.f32 %v1433, 0.0
          %v1562 = vmax.f32 %v1434, 0.0
          %v1563 = vmax.f32 %v1435, 0.0
          %v1564 = vmax.f32 %v1436, 0.0
          %v1565 = vmax.f32 %v1437, 0.0
          %v1566 = vmax.f32 %v1438, 0.0
          %v1567 = vmax.f32 %v1439, 0.0
          %v1568 = vmax.f32 %v1440, 0.0
          %v1569 = vmax.f32 %v1441, 0.0
          %v1570 = vmax.f32 %v1442, 0.0
          %v1571 = vmax.f32 %v1443, 0.0
          %v1572 = vmax.f32 %v1444, 0.0
          %v1573 = vmax.f32 %v1445, 0.0
          %v1574 = vmax.f32 %v1446, 0.0
          %v1575 = vmax.f32 %v1447, 0.0
          %v1576 = vmax.f32 %v1448, 0.0
          %v1577 = vmax.f32 %v1449, 0.0
          %v1578 = vmax.f32 %v1450, 0.0
          %v1579 = vmax.f32 %v1451, 0.0
          %v1580 = vmax.f32 %v1452, 0.0
          %v1581 = vmax.f32 %v1453, 0.0
          %v1582 = vmax.f32 %v1454, 0.0
          %v1583 = vmax.f32 %v1455, 0.0
          %v1584 = vmax.f32 %v1456, 0.0
          %v1585 = vmax.f32 %v1457, 0.0
          %v1586 = vmax.f32 %v1458, 0.0
          %v1587 = vmax.f32 %v1459, 0.0
          %v1588 = vmax.f32 %v1460, 0.0
          %v1589 = vmax.f32 %v1461, 0.0
          %v1590 = vmax.f32 %v1462, 0.0
          %v1591 = vmax.f32 %v1463, 0.0
          %v1592 = vmax.f32 %v1464, 0.0
          %v1593 = vmax.f32 %v1465, 0.0
          %v1594 = vmax.f32 %v1466, 0.0
          %v1595 = vmax.f32 %v1467, 0.0
          %v1596 = vmax.f32 %v1468, 0.0
          %v1597 = vmax.f32 %v1469, 0.0
          %v1598 = vmax.f32 %v1470, 0.0
          %v1599 = vmax.f32 %v1471, 0.0
          %v1600 = vmax.f32 %v1472, 0.0
          %v1601 = vmax.f32 %v1473, 0.0
          %1602 = vst [vmem:[%s357] sm:$0xff] %v1474
          %1603 = vst [vmem:[%s357 + $0x8] sm:$0xff] %v1475
          %1604 = vst [vmem:[%s357 + $0x10] sm:$0xff] %v1476
          %1605 = vst [vmem:[%s357 + $0x18] sm:$0xff] %v1477
          %1606 = vst [vmem:[%s357 + $0x20] sm:$0xff] %v1478
          %1607 = vst [vmem:[%s357 + $0x28] sm:$0xff] %v1479
          %1608 = vst [vmem:[%s357 + $0x30] sm:$0xff] %v1480
          %1609 = vst [vmem:[%s357 + $0x38] sm:$0xff] %v1481
          %1610 = vst [vmem:[%s357 + $0x40] sm:$0xff] %v1482
          %1611 = vst [vmem:[%s357 + $0x48] sm:$0xff] %v1483
          %1612 = vst [vmem:[%s357 + $0x50] sm:$0xff] %v1484
          %1613 = vst [vmem:[%s357 + $0x58] sm:$0xff] %v1485
          %1614 = vst [vmem:[%s357 + $0x60] sm:$0xff] %v1486
          %1615 = vst [vmem:[%s357 + $0x68] sm:$0xff] %v1487
          %1616 = vst [vmem:[%s357 + $0x70] sm:$0xff] %v1488
          %1617 = vst [vmem:[%s357 + $0x78] sm:$0xff] %v1489
          %1618 = vst [vmem:[%s357 + $0x80] sm:$0xff] %v1490
          %1619 = vst [vmem:[%s357 + $0x88] sm:$0xff] %v1491
          %1620 = vst [vmem:[%s357 + $0x90] sm:$0xff] %v1492
          %1621 = vst [vmem:[%s357 + $0x98] sm:$0xff] %v1493
          %1622 = vst [vmem:[%s357 + $0xa0] sm:$0xff] %v1494
          %1623 = vst [vmem:[%s357 + $0xa8] sm:$0xff] %v1495
          %1624 = vst [vmem:[%s357 + $0xb0] sm:$0xff] %v1496
          %1625 = vst [vmem:[%s357 + $0xb8] sm:$0xff] %v1497
          %1626 = vst [vmem:[%s357 + $0xc0] sm:$0xff] %v1498
          %1627 = vst [vmem:[%s357 + $0xc8] sm:$0xff] %v1499
          %1628 = vst [vmem:[%s357 + $0xd0] sm:$0xff] %v1500
          %1629 = vst [vmem:[%s357 + $0xd8] sm:$0xff] %v1501
          %1630 = vst [vmem:[%s357 + $0xe0] sm:$0xff] %v1502
          %1631 = vst [vmem:[%s357 + $0xe8] sm:$0xff] %v1503
          %1632 = vst [vmem:[%s357 + $0xf0] sm:$0xff] %v1504
          %1633 = vst [vmem:[%s357 + $0xf8] sm:$0xff] %v1505
          %1634 = vst [vmem:[%s357 + $0x100] sm:$0xff] %v1506
          %1635 = vst [vmem:[%s357 + $0x108] sm:$0xff] %v1507
          %1636 = vst [vmem:[%s357 + $0x110] sm:$0xff] %v1508
          %1637 = vst [vmem:[%s357 + $0x118] sm:$0xff] %v1509
          %1638 = vst [vmem:[%s357 + $0x120] sm:$0xff] %v1510
          %1639 = vst [vmem:[%s357 + $0x128] sm:$0xff] %v1511
          %1640 = vst [vmem:[%s357 + $0x130] sm:$0xff] %v1512
          %1641 = vst [vmem:[%s357 + $0x138] sm:$0xff] %v1513
          %1642 = vst [vmem:[%s357 + $0x140] sm:$0xff] %v1514
          %1643 = vst [vmem:[%s357 + $0x148] sm:$0xff] %v1515
          %1644 = vst [vmem:[%s357 + $0x150] sm:$0xff] %v1516
          %1645 = vst [vmem:[%s357 + $0x158] sm:$0xff] %v1517
          %1646 = vst [vmem:[%s357 + $0x160] sm:$0xff] %v1518
          %1647 = vst [vmem:[%s357 + $0x168] sm:$0xff] %v1519
          %1648 = vst [vmem:[%s357 + $0x170] sm:$0xff] %v1520
          %1649 = vst [vmem:[%s357 + $0x178] sm:$0xff] %v1521
          %1650 = vst [vmem:[%s357 + $0x180] sm:$0xff] %v1522
          %1651 = vst [vmem:[%s357 + $0x188] sm:$0xff] %v1523
          %1652 = vst [vmem:[%s357 + $0x190] sm:$0xff] %v1524
          %1653 = vst [vmem:[%s357 + $0x198] sm:$0xff] %v1525
          %1654 = vst [vmem:[%s357 + $0x1a0] sm:$0xff] %v1526
          %1655 = vst [vmem:[%s357 + $0x1a8] sm:$0xff] %v1527
          %1656 = vst [vmem:[%s357 + $0x1b0] sm:$0xff] %v1528
          %1657 = vst [vmem:[%s357 + $0x1b8] sm:$0xff] %v1529
          %1658 = vst [vmem:[%s357 + $0x1c0] sm:$0xff] %v1530
          %1659 = vst [vmem:[%s357 + $0x1c8] sm:$0xff] %v1531
          %1660 = vst [vmem:[%s357 + $0x1d0] sm:$0xff] %v1532
          %1661 = vst [vmem:[%s357 + $0x1d8] sm:$0xff] %v1533
          %1662 = vst [vmem:[%s357 + $0x1e0] sm:$0xff] %v1534
          %1663 = vst [vmem:[%s357 + $0x1e8] sm:$0xff] %v1535
          %1664 = vst [vmem:[%s357 + $0x1f0] sm:$0xff] %v1536
          %1665 = vst [vmem:[%s357 + $0x1f8] sm:$0xff] %v1537
          %1666 = vst [vmem:[%s357 + $0x200] sm:$0xff] %v1538
          %1667 = vst [vmem:[%s357 + $0x208] sm:$0xff] %v1539
          %1668 = vst [vmem:[%s357 + $0x210] sm:$0xff] %v1540
          %1669 = vst [vmem:[%s357 + $0x218] sm:$0xff] %v1541
          %1670 = vst [vmem:[%s357 + $0x220] sm:$0xff] %v1542
          %1671 = vst [vmem:[%s357 + $0x228] sm:$0xff] %v1543
          %1672 = vst [vmem:[%s357 + $0x230] sm:$0xff] %v1544
          %1673 = vst [vmem:[%s357 + $0x238] sm:$0xff] %v1545
          %1674 = vst [vmem:[%s357 + $0x240] sm:$0xff] %v1546
          %1675 = vst [vmem:[%s357 + $0x248] sm:$0xff] %v1547
          %1676 = vst [vmem:[%s357 + $0x250] sm:$0xff] %v1548
          %1677 = vst [vmem:[%s357 + $0x258] sm:$0xff] %v1549
          %1678 = vst [vmem:[%s357 + $0x260] sm:$0xff] %v1550
          %1679 = vst [vmem:[%s357 + $0x268] sm:$0xff] %v1551
          %1680 = vst [vmem:[%s357 + $0x270] sm:$0xff] %v1552
          %1681 = vst [vmem:[%s357 + $0x278] sm:$0xff] %v1553
          %1682 = vst [vmem:[%s357 + $0x280] sm:$0xff] %v1554
          %1683 = vst [vmem:[%s357 + $0x288] sm:$0xff] %v1555
          %1684 = vst [vmem:[%s357 + $0x290] sm:$0xff] %v1556
          %1685 = vst [vmem:[%s357 + $0x298] sm:$0xff] %v1557
          %1686 = vst [vmem:[%s357 + $0x2a0] sm:$0xff] %v1558
          %1687 = vst [vmem:[%s357 + $0x2a8] sm:$0xff] %v1559
          %1688 = vst [vmem:[%s357 + $0x2b0] sm:$0xff] %v1560
          %1689 = vst [vmem:[%s357 + $0x2b8] sm:$0xff] %v1561
          %1690 = vst [vmem:[%s357 + $0x2c0] sm:$0xff] %v1562
          %1691 = vst [vmem:[%s357 + $0x2c8] sm:$0xff] %v1563
          %1692 = vst [vmem:[%s357 + $0x2d0] sm:$0xff] %v1564
          %1693 = vst [vmem:[%s357 + $0x2d8] sm:$0xff] %v1565
          %1694 = vst [vmem:[%s357 + $0x2e0] sm:$0xff] %v1566
          %1695 = vst [vmem:[%s357 + $0x2e8] sm:$0xff] %v1567
          %1696 = vst [vmem:[%s357 + $0x2f0] sm:$0xff] %v1568
          %1697 = vst [vmem:[%s357 + $0x2f8] sm:$0xff] %v1569
          %1698 = vst [vmem:[%s357 + $0x300] sm:$0xff] %v1570
          %1699 = vst [vmem:[%s357 + $0x308] sm:$0xff] %v1571
          %1700 = vst [vmem:[%s357 + $0x310] sm:$0xff] %v1572
          %1701 = vst [vmem:[%s357 + $0x318] sm:$0xff] %v1573
          %1702 = vst [vmem:[%s357 + $0x320] sm:$0xff] %v1574
          %1703 = vst [vmem:[%s357 + $0x328] sm:$0xff] %v1575
          %1704 = vst [vmem:[%s357 + $0x330] sm:$0xff] %v1576
          %1705 = vst [vmem:[%s357 + $0x338] sm:$0xff] %v1577
          %1706 = vst [vmem:[%s357 + $0x340] sm:$0xff] %v1578
          %1707 = vst [vmem:[%s357 + $0x348] sm:$0xff] %v1579
          %1708 = vst [vmem:[%s357 + $0x350] sm:$0xff] %v1580
          %1709 = vst [vmem:[%s357 + $0x358] sm:$0xff] %v1581
          %1710 = vst [vmem:[%s357 + $0x360] sm:$0xff] %v1582
          %1711 = vst [vmem:[%s357 + $0x368] sm:$0xff] %v1583
          %1712 = vst [vmem:[%s357 + $0x370] sm:$0xff] %v1584
          %1713 = vst [vmem:[%s357 + $0x378] sm:$0xff] %v1585
          %1714 = vst [vmem:[%s357 + $0x380] sm:$0xff] %v1586
          %1715 = vst [vmem:[%s357 + $0x388] sm:$0xff] %v1587
          %1716 = vst [vmem:[%s357 + $0x390] sm:$0xff] %v1588
          %1717 = vst [vmem:[%s357 + $0x398] sm:$0xff] %v1589
          %1718 = vst [vmem:[%s357 + $0x3a0] sm:$0xff] %v1590
          %1719 = vst [vmem:[%s357 + $0x3a8] sm:$0xff] %v1591
          %1720 = vst [vmem:[%s357 + $0x3b0] sm:$0xff] %v1592
          %1721 = vst [vmem:[%s357 + $0x3b8] sm:$0xff] %v1593
          %1722 = vst [vmem:[%s357 + $0x3c0] sm:$0xff] %v1594
          %1723 = vst [vmem:[%s357 + $0x3c8] sm:$0xff] %v1595
          %1724 = vst [vmem:[%s357 + $0x3d0] sm:$0xff] %v1596
          %1725 = vst [vmem:[%s357 + $0x3d8] sm:$0xff] %v1597
          %1726 = vst [vmem:[%s357 + $0x3e0] sm:$0xff] %v1598
          %1727 = vst [vmem:[%s357 + $0x3e8] sm:$0xff] %v1599
          %1728 = vst [vmem:[%s357 + $0x3f0] sm:$0xff] %v1600
          %1729 = vst [vmem:[%s357 + $0x3f8] sm:$0xff] %v1601
        $region72: #{adapter_forward.1} parent=35 // pred_fallthru
          _
        %s1730 = sand.u32 %s162, 1
        %s1731 = scalar_lea.sflag [#allocation6], %s1730
        %s1732 = sand.u32 %s162, 1
        %s1733 = smul.addr %s1732, 1024
        %s1734 = scalar_lea.vmem [#allocation12], %s1733
        // Predicated region
        $region73: #{adapter_forward.1} parent=35 // pred_check
          %p1735 = pneg %p172
        $region74: #{adapter_forward.1} parent=35 // pred_check_branch
          %1737 = sbr.rel (%p1735) target = $region76
        $region75: #{adapter_forward.1} parent=35 // pred_region
          %s1738 = smul.u32 2, %s32
          %s1740 = ssub.s32 16384, 16384
          %1741 = vsyncadd %s1731, %s1740
          %s1742 = smul.addr %s1738, 128
          %s1743 = scalar_lea.hbm %s4, %s1742
          %s1744 = sshll.u32 %s1734, 4
          %s1745 = int_to_ptr.vmem [resolvable:$true] %s1744
          %1750 = dma.vmem_to_hbm [thread:$0]  %s1745, 16384, %s1743, %s1731, 256, 512, 16
        $region76: #{adapter_forward.1} parent=35 // pred_fallthru
          _
      $region36: #{adapter_forward.1} parent=5 // pred_fallthru
        _
      %p1751 = scmp.le.s32.totalorder 2, %s22
      // Predicated region
      $region77: #{adapter_forward.1} parent=5 // pred_check
        %p1752 = pneg %p1751
      $region78: #{adapter_forward.1} parent=5 // pred_check_branch
        %1754 = sbr.rel (%p1752) target = $region80
      $region79: #{adapter_forward.1} parent=5 // pred_region
        %s1755 = ssub.s32 %s22, 2
        // Predicated region
        $region81: #{adapter_forward.1} parent=79 // pred_check
          %p1756 = pneg %p178
        $region82: #{adapter_forward.1} parent=79 // pred_check_branch
          %1758 = sbr.rel (%p1756) target = $region84
        $region83: #{adapter_forward.1} parent=79 // pred_region
          %s1759 = sand.u32 %s163, 1
          %s1760 = scalar_lea.sflag [#allocation6], %s1759
          %s1761 = sand.u32 %s163, 1
          %s1762 = smul.addr %s1761, 1024
          %s1763 = scalar_lea.vmem [#allocation12], %s1762
          %1764 = dma.done %s1760, 16384
        $region84: #{adapter_forward.1} parent=79 // pred_fallthru
          _
      $region80: #{adapter_forward.1} parent=5 // pred_fallthru
        _
    $region6: #{adapter_forward.1} parent=1 // loop_footer
      %s26 = sadd.s32 1, %s22
    $region7: #{adapter_forward.1} parent=1 // loop_footer_branch
      %21 = sbr.rel target = $region3
    $region8: #{adapter_forward.1} parent=1 // loop_exit
      _
    %1765 = vsyncpa [#allocation5], 1
    %s1766 = scalar_lea.sflag [#allocation5], 1
    %1767 = vsyncpa %s1766, 1
    %1768 = vsyncpa [#allocation8], 1
    %s1769 = scalar_lea.sflag [#allocation8], 1
    %1770 = vsyncpa %s1769, 1
    %1771 = vsyncpa [#allocation11], 1
    %s1772 = scalar_lea.sflag [#allocation11], 1
    %1773 = vsyncpa %s1772, 1
    %1774 = vsyncpa [#allocation6], 1
    %s1775 = scalar_lea.sflag [#allocation6], 1
    %1776 = vsyncpa %s1775, 1

</llo_original>
